<compile_context>
chip_gen: v5e
topology: v5e:2x2
jax: 0.10.0
libtpu: 0.0.40
codegen_flags: <defaults>
</compile_context>

<pallas_src>
import functools

import jax
import jax.numpy as jnp
from jax.experimental import pallas as pl
from jax.experimental.pallas import tpu as pltpu

ALPHA = 0.2  # LeakyReLU negative slope


def gat_fused_kernel(h_ref, w_ref, adj_ref, out_ref, *, num_heads, out_dim, alpha):
    """Single-invocation GAT forward.

    h_ref   : (N, F)             raw node features
    w_ref   : (F, H*D + 2H)      [W_all | W@attn_l | W@attn_r]
    adj_ref : (N, N)             dense adjacency, adj[dst, src] in {0, 1}
    out_ref : (N, H*D)           lane-dense output, head-major columns
    """
    n = h_ref.shape[0]
    h = h_ref[...]                      # (N, F)
    w = w_ref[...]                      # (F, H*D + 2H)
    adj = adj_ref[...]                  # (N, N)

    hd = num_heads * out_dim

    # One MXU pass produces the per-head features AND both attention scores.
    proj = jnp.dot(h, w, preferred_element_type=jnp.float32)   # (N, H*D + 2H)
    ft_all = proj[:, :hd]                                      # (N, H*D)
    a1_all = proj[:, hd:hd + num_heads]                        # (N, H)  src scores
    a2_all = proj[:, hd + num_heads:hd + 2 * num_heads]        # (N, H)  dst scores

    # One XLU transpose for all heads instead of H per-head (N,1)->(1,N) transposes.
    a1_rows = jnp.transpose(a1_all)                            # (H, N)

    edge_mask = adj > 0.0
    ones_col = jnp.ones((n, 1), dtype=jnp.float32)

    head_outs = []
    for head in range(num_heads):       # H=4: unrolled Python loop, no grid overhead
        ft = ft_all[:, head * out_dim:(head + 1) * out_dim]    # (N, D)
        a1 = a1_rows[head:head + 1, :]                         # (1, N) src scores
        a2 = a2_all[:, head:head + 1]                          # (N, 1) dst scores

        # edge_attention: s[v, u] = leaky_relu(a1[u] + a2[v])
        s = a2 + a1                                            # (N_dst, N_src)
        s = jnp.maximum(s, alpha * s)                          # leaky_relu, 0<alpha<1
        # torch.exp(a).clamp(-10, 10): exp >= 0 so only the upper bound binds.
        e = jnp.where(edge_mask, jnp.minimum(jnp.exp(s), 10.0), 0.0)

        # update_all fused with the degree sum: [num | z] = e @ [ft | 1]
        agg = jnp.dot(e, jnp.concatenate([ft, ones_col], axis=-1),
                      preferred_element_type=jnp.float32)      # (N, D+1)
        num = agg[:, :out_dim]
        z = agg[:, out_dim:out_dim + 1]
        head_outs.append(num / z)

    # Single lane-dense store of all heads.
    out_ref[...] = jnp.concatenate(head_outs, axis=-1).astype(out_ref.dtype)


def gat_forward(x, w_fc, attn_l, attn_r, adj):
    """x: (N,F); w_fc: (H*D, F); attn_l/attn_r: (H, D, 1); adj: (N,N) dst-major."""
    N, F = x.shape
    H, D, _ = attn_l.shape

    # Per-head projection weights, head-major columns: W_all[:, h*D + d] = W_h[:, d].
    w_heads = jnp.transpose(w_fc.reshape(H, D, F), (0, 2, 1))       # (H, F, D)
    w_all = jnp.transpose(w_heads, (1, 0, 2)).reshape(F, H * D)     # (F, H*D)
    # Fold attn vectors into the projection:  (x @ W_h) @ a_h == x @ (W_h @ a_h).
    wa1 = jnp.einsum('hfd,hdo->fh', w_heads, attn_l)                # (F, H)
    wa2 = jnp.einsum('hfd,hdo->fh', w_heads, attn_r)                # (F, H)
    w_aug = jnp.concatenate([w_all, wa1, wa2], axis=-1)             # (F, H*D + 2H)

    out = pl.pallas_call(
        functools.partial(gat_fused_kernel, num_heads=H, out_dim=D, alpha=ALPHA),
        out_shape=jax.ShapeDtypeStruct((N, H * D), x.dtype),
        grid_spec=pltpu.PrefetchScalarGridSpec(
            num_scalar_prefetch=0,
            grid=(1,),                                              # single invocation
            in_specs=[
                pl.BlockSpec((N, F), lambda i: (0, 0)),             # node features
                pl.BlockSpec((F, H * D + 2 * H), lambda i: (0, 0)), # fused weights
                pl.BlockSpec((N, N), lambda i: (0, 0)),             # adjacency
            ],
            out_specs=pl.BlockSpec((N, H * D), lambda i: (0, 0)),   # lane-dense out
        ),
        compiler_params=pltpu.CompilerParams(
            dimension_semantics=("arbitrary",)),
    )(x, w_aug, adj)

    # (N, H*D) -> (N, H, D): a contiguous reshape, not a transpose.
    return out.reshape(N, H, D)


def gat_reference(x, w_fc, attn_l, attn_r, adj, alpha=ALPHA):
    """Pure-JAX reference mirroring the PyTorch module's forward pass."""
    N, F = x.shape
    H, D, _ = attn_l.shape
    ft = (x @ w_fc.T).reshape(N, H, D)                           # (N, H, D)
    a1 = jnp.einsum('nhd,hdo->nh', ft, attn_l)                   # (N, H) src scores
    a2 = jnp.einsum('nhd,hdo->nh', ft, attn_r)                   # (N, H) dst scores
    s = a2[:, None, :] + a1[None, :, :]                          # s[v, u, h]
    s = jnp.where(s >= 0, s, alpha * s)
    e = jnp.clip(jnp.exp(s), -10.0, 10.0) * adj[:, :, None]
    z = e.sum(axis=1)                                            # (N, H)
    num = jnp.einsum('vuh,uhd->vhd', e, ft)                      # (N, H, D)
    return num / z[:, :, None]


def xavier_normal(key, shape, fan_in, fan_out, gain):
    std = gain * (2.0 / (fan_in + fan_out)) ** 0.5
    return std * jax.random.normal(key, shape, dtype=jnp.float32)


if __name__ == "__main__":
    N, IN_DIM, OUT_DIM, HEADS = 128, 32, 16, 4

    key = jax.random.PRNGKey(0)
    k_x, k_w, k_al, k_ar, k_adj = jax.random.split(key, 5)

    x = jax.random.normal(k_x, (N, IN_DIM), dtype=jnp.float32)

    # nn.Linear(in_dim, heads*out_dim, bias=False).weight : (H*D, F), xavier gain=1.414
    w_fc = xavier_normal(k_w, (HEADS * OUT_DIM, IN_DIM),
                         fan_in=IN_DIM, fan_out=HEADS * OUT_DIM, gain=1.414)
    # attn_l / attn_r : (H, D, 1), xavier gain=1.414
    attn_l = xavier_normal(k_al, (HEADS, OUT_DIM, 1),
                           fan_in=OUT_DIM, fan_out=HEADS, gain=1.414)
    attn_r = xavier_normal(k_ar, (HEADS, OUT_DIM, 1),
                           fan_in=OUT_DIM, fan_out=HEADS, gain=1.414)

    # Random sparse directed graph + self-loops (so every dst has >=1 incoming edge,
    # which the module implicitly requires for the division by z).
    adj = jax.random.bernoulli(k_adj, 0.1, (N, N)).astype(jnp.float32)  # adj[dst, src]
    adj = jnp.maximum(adj, jnp.eye(N, dtype=jnp.float32))

    out = jax.block_until_ready(gat_forward(x, w_fc, attn_l, attn_r, adj))
    ref = jax.block_until_ready(gat_reference(x, w_fc, attn_l, attn_r, adj))

    assert out.shape == (N, HEADS, OUT_DIM)
    assert jnp.allclose(out, ref, atol=1e-4, rtol=1e-4)

    print("KERNEL_OK")
</pallas_src>

<mosaic_0001>
module attributes {stable_mosaic.version = 11 : i64} {
  func.func @gat_fused_kernel(%arg0: i32, %arg1: memref<128x32xf32, #tpu.memory_space<vmem>>, %arg2: memref<32x72xf32, #tpu.memory_space<vmem>>, %arg3: memref<128x128xf32, #tpu.memory_space<vmem>>, %arg4: memref<128x64xf32, #tpu.memory_space<vmem>>) attributes {dimension_semantics = [#tpu.dimension_semantics<arbitrary>], iteration_bounds = array<i64: 1>, scalar_prefetch = 0 : i64, scratch_operands = 0 : i64, tpu.core_type = #tpu.core_type<tc>, window_params = [{pipeline_mode = #tpu.pipeline_mode<synchronous>, transform_indices = @transform_0, window_bounds = array<i64: 128, 32>}, {pipeline_mode = #tpu.pipeline_mode<synchronous>, transform_indices = @transform_1, window_bounds = array<i64: 32, 72>}, {pipeline_mode = #tpu.pipeline_mode<synchronous>, transform_indices = @transform_2, window_bounds = array<i64: 128, 128>}, {pipeline_mode = #tpu.pipeline_mode<synchronous>, transform_indices = @transform_3, window_bounds = array<i64: 128, 64>}]} {
    %c0 = arith.constant 0 : index
    %c0_0 = arith.constant 0 : index
    %0 = vector.load %arg1[%c0, %c0_0] : memref<128x32xf32, #tpu.memory_space<vmem>>, vector<128x32xf32>
    %c0_1 = arith.constant 0 : index
    %c0_2 = arith.constant 0 : index
    %1 = vector.load %arg2[%c0_1, %c0_2] : memref<32x72xf32, #tpu.memory_space<vmem>>, vector<32x72xf32>
    %c0_3 = arith.constant 0 : index
    %c0_4 = arith.constant 0 : index
    %2 = vector.load %arg3[%c0_3, %c0_4] : memref<128x128xf32, #tpu.memory_space<vmem>>, vector<128x128xf32>
    %cst = arith.constant dense<0.000000e+00> : vector<128x72xf32>
    %3 = tpu.matmul %0, %1, %cst {dimension_numbers = #tpu.dot_dimension_numbers<[1], [0], [0], [1], [0, 0, 1, 1], [], []>} : vector<128x32xf32>, vector<32x72xf32>, vector<128x72xf32> -> vector<128x72xf32>
    %4 = vector.extract_strided_slice %3 {offsets = [0, 0], sizes = [128, 64], strides = [1, 1]} : vector<128x72xf32> to vector<128x64xf32>
    %5 = vector.extract_strided_slice %3 {offsets = [0, 64], sizes = [128, 4], strides = [1, 1]} : vector<128x72xf32> to vector<128x4xf32>
    %6 = vector.extract_strided_slice %3 {offsets = [0, 68], sizes = [128, 4], strides = [1, 1]} : vector<128x72xf32> to vector<128x4xf32>
    %7 = tpu.transpose %5, [1, 0] : vector<128x4xf32> -> vector<4x128xf32>
    %cst_5 = arith.constant 0.000000e+00 : f32
    %8 = vector.broadcast %cst_5 : f32 to vector<128x128xf32>
    %9 = arith.cmpf ogt, %2, %8 : vector<128x128xf32>
    %cst_6 = arith.constant 1.000000e+00 : f32
    %10 = vector.broadcast %cst_6 : f32 to vector<128x1xf32>
    %11 = vector.extract_strided_slice %4 {offsets = [0, 0], sizes = [128, 16], strides = [1, 1]} : vector<128x64xf32> to vector<128x16xf32>
    %12 = vector.extract_strided_slice %7 {offsets = [0, 0], sizes = [1, 128], strides = [1, 1]} : vector<4x128xf32> to vector<1x128xf32>
    %13 = vector.extract_strided_slice %6 {offsets = [0, 0], sizes = [128, 1], strides = [1, 1]} : vector<128x4xf32> to vector<128x1xf32>
    %14 = vector.broadcast %13 : vector<128x1xf32> to vector<128x128xf32>
    %15 = vector.broadcast %12 : vector<1x128xf32> to vector<128x128xf32>
    %16 = arith.addf %14, %15 : vector<128x128xf32>
    %cst_7 = arith.constant 2.000000e-01 : f32
    %17 = vector.broadcast %cst_7 : f32 to vector<128x128xf32>
    %18 = arith.mulf %17, %16 : vector<128x128xf32>
    %19 = arith.maximumf %16, %18 : vector<128x128xf32>
    %20 = math.exp %19 : vector<128x128xf32>
    %cst_8 = arith.constant 1.000000e+01 : f32
    %21 = vector.broadcast %cst_8 : f32 to vector<128x128xf32>
    %22 = arith.minimumf %20, %21 : vector<128x128xf32>
    %cst_9 = arith.constant 0.000000e+00 : f32
    %23 = vector.broadcast %cst_9 : f32 to vector<128x128xf32>
    %24 = arith.select %9, %22, %23 : vector<128x128xi1>, vector<128x128xf32>
    %25 = tpu.concatenate %11, %10 in 1 : vector<128x16xf32>, vector<128x1xf32> -> vector<128x17xf32>
    %cst_10 = arith.constant dense<0.000000e+00> : vector<128x17xf32>
    %26 = tpu.matmul %24, %25, %cst_10 {dimension_numbers = #tpu.dot_dimension_numbers<[1], [0], [0], [1], [0, 0, 1, 1], [], []>} : vector<128x128xf32>, vector<128x17xf32>, vector<128x17xf32> -> vector<128x17xf32>
    %27 = vector.extract_strided_slice %26 {offsets = [0, 0], sizes = [128, 16], strides = [1, 1]} : vector<128x17xf32> to vector<128x16xf32>
    %28 = vector.extract_strided_slice %26 {offsets = [0, 16], sizes = [128, 1], strides = [1, 1]} : vector<128x17xf32> to vector<128x1xf32>
    %29 = vector.broadcast %28 : vector<128x1xf32> to vector<128x16xf32>
    %30 = arith.divf %27, %29 : vector<128x16xf32>
    %31 = vector.extract_strided_slice %4 {offsets = [0, 16], sizes = [128, 16], strides = [1, 1]} : vector<128x64xf32> to vector<128x16xf32>
    %32 = vector.extract_strided_slice %7 {offsets = [1, 0], sizes = [1, 128], strides = [1, 1]} : vector<4x128xf32> to vector<1x128xf32>
    %33 = vector.extract_strided_slice %6 {offsets = [0, 1], sizes = [128, 1], strides = [1, 1]} : vector<128x4xf32> to vector<128x1xf32>
    %34 = vector.broadcast %33 : vector<128x1xf32> to vector<128x128xf32>
    %35 = vector.broadcast %32 : vector<1x128xf32> to vector<128x128xf32>
    %36 = arith.addf %34, %35 : vector<128x128xf32>
    %cst_11 = arith.constant 2.000000e-01 : f32
    %37 = vector.broadcast %cst_11 : f32 to vector<128x128xf32>
    %38 = arith.mulf %37, %36 : vector<128x128xf32>
    %39 = arith.maximumf %36, %38 : vector<128x128xf32>
    %40 = math.exp %39 : vector<128x128xf32>
    %cst_12 = arith.constant 1.000000e+01 : f32
    %41 = vector.broadcast %cst_12 : f32 to vector<128x128xf32>
    %42 = arith.minimumf %40, %41 : vector<128x128xf32>
    %cst_13 = arith.constant 0.000000e+00 : f32
    %43 = vector.broadcast %cst_13 : f32 to vector<128x128xf32>
    %44 = arith.select %9, %42, %43 : vector<128x128xi1>, vector<128x128xf32>
    %45 = tpu.concatenate %31, %10 in 1 : vector<128x16xf32>, vector<128x1xf32> -> vector<128x17xf32>
    %cst_14 = arith.constant dense<0.000000e+00> : vector<128x17xf32>
    %46 = tpu.matmul %44, %45, %cst_14 {dimension_numbers = #tpu.dot_dimension_numbers<[1], [0], [0], [1], [0, 0, 1, 1], [], []>} : vector<128x128xf32>, vector<128x17xf32>, vector<128x17xf32> -> vector<128x17xf32>
    %47 = vector.extract_strided_slice %46 {offsets = [0, 0], sizes = [128, 16], strides = [1, 1]} : vector<128x17xf32> to vector<128x16xf32>
    %48 = vector.extract_strided_slice %46 {offsets = [0, 16], sizes = [128, 1], strides = [1, 1]} : vector<128x17xf32> to vector<128x1xf32>
    %49 = vector.broadcast %48 : vector<128x1xf32> to vector<128x16xf32>
    %50 = arith.divf %47, %49 : vector<128x16xf32>
    %51 = vector.extract_strided_slice %4 {offsets = [0, 32], sizes = [128, 16], strides = [1, 1]} : vector<128x64xf32> to vector<128x16xf32>
    %52 = vector.extract_strided_slice %7 {offsets = [2, 0], sizes = [1, 128], strides = [1, 1]} : vector<4x128xf32> to vector<1x128xf32>
    %53 = vector.extract_strided_slice %6 {offsets = [0, 2], sizes = [128, 1], strides = [1, 1]} : vector<128x4xf32> to vector<128x1xf32>
    %54 = vector.broadcast %53 : vector<128x1xf32> to vector<128x128xf32>
    %55 = vector.broadcast %52 : vector<1x128xf32> to vector<128x128xf32>
    %56 = arith.addf %54, %55 : vector<128x128xf32>
    %cst_15 = arith.constant 2.000000e-01 : f32
    %57 = vector.broadcast %cst_15 : f32 to vector<128x128xf32>
    %58 = arith.mulf %57, %56 : vector<128x128xf32>
    %59 = arith.maximumf %56, %58 : vector<128x128xf32>
    %60 = math.exp %59 : vector<128x128xf32>
    %cst_16 = arith.constant 1.000000e+01 : f32
    %61 = vector.broadcast %cst_16 : f32 to vector<128x128xf32>
    %62 = arith.minimumf %60, %61 : vector<128x128xf32>
    %cst_17 = arith.constant 0.000000e+00 : f32
    %63 = vector.broadcast %cst_17 : f32 to vector<128x128xf32>
    %64 = arith.select %9, %62, %63 : vector<128x128xi1>, vector<128x128xf32>
    %65 = tpu.concatenate %51, %10 in 1 : vector<128x16xf32>, vector<128x1xf32> -> vector<128x17xf32>
    %cst_18 = arith.constant dense<0.000000e+00> : vector<128x17xf32>
    %66 = tpu.matmul %64, %65, %cst_18 {dimension_numbers = #tpu.dot_dimension_numbers<[1], [0], [0], [1], [0, 0, 1, 1], [], []>} : vector<128x128xf32>, vector<128x17xf32>, vector<128x17xf32> -> vector<128x17xf32>
    %67 = vector.extract_strided_slice %66 {offsets = [0, 0], sizes = [128, 16], strides = [1, 1]} : vector<128x17xf32> to vector<128x16xf32>
    %68 = vector.extract_strided_slice %66 {offsets = [0, 16], sizes = [128, 1], strides = [1, 1]} : vector<128x17xf32> to vector<128x1xf32>
    %69 = vector.broadcast %68 : vector<128x1xf32> to vector<128x16xf32>
    %70 = arith.divf %67, %69 : vector<128x16xf32>
    %71 = vector.extract_strided_slice %4 {offsets = [0, 48], sizes = [128, 16], strides = [1, 1]} : vector<128x64xf32> to vector<128x16xf32>
    %72 = vector.extract_strided_slice %7 {offsets = [3, 0], sizes = [1, 128], strides = [1, 1]} : vector<4x128xf32> to vector<1x128xf32>
    %73 = vector.extract_strided_slice %6 {offsets = [0, 3], sizes = [128, 1], strides = [1, 1]} : vector<128x4xf32> to vector<128x1xf32>
    %74 = vector.broadcast %73 : vector<128x1xf32> to vector<128x128xf32>
    %75 = vector.broadcast %72 : vector<1x128xf32> to vector<128x128xf32>
    %76 = arith.addf %74, %75 : vector<128x128xf32>
    %cst_19 = arith.constant 2.000000e-01 : f32
    %77 = vector.broadcast %cst_19 : f32 to vector<128x128xf32>
    %78 = arith.mulf %77, %76 : vector<128x128xf32>
    %79 = arith.maximumf %76, %78 : vector<128x128xf32>
    %80 = math.exp %79 : vector<128x128xf32>
    %cst_20 = arith.constant 1.000000e+01 : f32
    %81 = vector.broadcast %cst_20 : f32 to vector<128x128xf32>
    %82 = arith.minimumf %80, %81 : vector<128x128xf32>
    %cst_21 = arith.constant 0.000000e+00 : f32
    %83 = vector.broadcast %cst_21 : f32 to vector<128x128xf32>
    %84 = arith.select %9, %82, %83 : vector<128x128xi1>, vector<128x128xf32>
    %85 = tpu.concatenate %71, %10 in 1 : vector<128x16xf32>, vector<128x1xf32> -> vector<128x17xf32>
    %cst_22 = arith.constant dense<0.000000e+00> : vector<128x17xf32>
    %86 = tpu.matmul %84, %85, %cst_22 {dimension_numbers = #tpu.dot_dimension_numbers<[1], [0], [0], [1], [0, 0, 1, 1], [], []>} : vector<128x128xf32>, vector<128x17xf32>, vector<128x17xf32> -> vector<128x17xf32>
    %87 = vector.extract_strided_slice %86 {offsets = [0, 0], sizes = [128, 16], strides = [1, 1]} : vector<128x17xf32> to vector<128x16xf32>
    %88 = vector.extract_strided_slice %86 {offsets = [0, 16], sizes = [128, 1], strides = [1, 1]} : vector<128x17xf32> to vector<128x1xf32>
    %89 = vector.broadcast %88 : vector<128x1xf32> to vector<128x16xf32>
    %90 = arith.divf %87, %89 : vector<128x16xf32>
    %91 = tpu.concatenate %30, %50, %70, %90 in 1 : vector<128x16xf32>, vector<128x16xf32>, vector<128x16xf32>, vector<128x16xf32> -> vector<128x64xf32>
    %c0_23 = arith.constant 0 : index
    %c0_24 = arith.constant 0 : index
    %92 = vector.load %arg4[%c0_23, %c0_24] : memref<128x64xf32, #tpu.memory_space<vmem>>, vector<128x64xf32>
    tpu.vector_store %arg4[%c0_23, %c0_24], %91 {strides = array<i32>} : memref<128x64xf32, #tpu.memory_space<vmem>>, vector<128x64xf32>,
    return
  }
  func.func @transform_0(%arg0: i32) -> (i32, i32) {
    %c0_i32 = arith.constant 0 : i32
    %c0_i32_0 = arith.constant 0 : i32
    %c0_i32_1 = arith.constant 0 : i32
    return %c0_i32, %c0_i32_0 : i32, i32
  }
  func.func @transform_1(%arg0: i32) -> (i32, i32) {
    %c0_i32 = arith.constant 0 : i32
    %c0_i32_0 = arith.constant 0 : i32
    %c0_i32_1 = arith.constant 0 : i32
    return %c0_i32, %c0_i32_0 : i32, i32
  }
  func.func @transform_2(%arg0: i32) -> (i32, i32) {
    %c0_i32 = arith.constant 0 : i32
    %c0_i32_0 = arith.constant 0 : i32
    %c0_i32_1 = arith.constant 0 : i32
    return %c0_i32, %c0_i32_0 : i32, i32
  }
  func.func @transform_3(%arg0: i32) -> (i32, i32) {
    %c0_i32 = arith.constant 0 : i32
    %c0_i32_0 = arith.constant 0 : i32
    %c0_i32_1 = arith.constant 0 : i32
    return %c0_i32, %c0_i32_0 : i32, i32
  }
}

</mosaic_0001>

<llo_original>
// kernel: tpu_custom_call.1
$region0: #{tpu_custom_call.1}
  #allocation0 [shape = 'u32[]', space=smem, size = 0x4, offset = 0x4, fixed_abs, tag = 'smem constant byte address 0x4 - core index']
  #allocation1 [shape = 'u32[72,128]{1,0:T(1,128)}', space=vmem, size = 0x9000, scoped, tag = 'internal scratch']
  %s0 = inlined_call_operand.vmem [shape: f32[128,32], index: 0, kind: input, shape index: {}]
  %s1 = inlined_call_operand.vmem [shape: f32[32,72], index: 1, kind: input, shape index: {}]
  %s2 = inlined_call_operand.vmem [shape: f32[128,128], index: 2, kind: input, shape index: {}]
  %s3 = inlined_call_operand.vmem [shape: f32[128,64], index: 3, kind: output, shape index: {}]
  %s4 = sld [smem:[#allocation0]]
  $region22: #{tpu_custom_call.1} parent=0
    _
  %s6 = ssub.s32 1, %s4
  %s7 = scalar_select 0, %s6, %s4
  // Predicated region
  $region2: #{tpu_custom_call.1} parent=0 // pred_check
    _
  $region3: #{tpu_custom_call.1} parent=0 // pred_check_branch
    %9 = sbr.rel (0) target = $region5
  $region4: #{tpu_custom_call.1} parent=0 // pred_region
    _
  $region5: #{tpu_custom_call.1} parent=0 // pred_fallthru
    _
  // Predicated region
  $region6: #{tpu_custom_call.1} parent=0 // pred_check
    _
  $region7: #{tpu_custom_call.1} parent=0 // pred_check_branch
    %11 = sbr.rel (0) target = $region9
  $region8: #{tpu_custom_call.1} parent=0 // pred_region
    _
  $region9: #{tpu_custom_call.1} parent=0 // pred_fallthru
    _
  // Predicated region
  $region10: #{tpu_custom_call.1} parent=0 // pred_check
    _
  $region11: #{tpu_custom_call.1} parent=0 // pred_check_branch
    %13 = sbr.rel (0) target = $region13
  $region12: #{tpu_custom_call.1} parent=0 // pred_region
    _
  $region13: #{tpu_custom_call.1} parent=0 // pred_fallthru
    _
  %v14 = vld [vmem:[%s0] sm:$0xff]
  %v15 = vld [vmem:[%s0 + $0x8] sm:$0xff]
  %v16 = vld [vmem:[%s0 + $0x10] sm:$0xff]
  %v17 = vld [vmem:[%s0 + $0x18] sm:$0xff]
  %v18 = vld [vmem:[%s0 + $0x20] sm:$0xff]
  %v19 = vld [vmem:[%s0 + $0x28] sm:$0xff]
  %v20 = vld [vmem:[%s0 + $0x30] sm:$0xff]
  %v21 = vld [vmem:[%s0 + $0x38] sm:$0xff]
  %v22 = vld [vmem:[%s0 + $0x40] sm:$0xff]
  %v23 = vld [vmem:[%s0 + $0x48] sm:$0xff]
  %v24 = vld [vmem:[%s0 + $0x50] sm:$0xff]
  %v25 = vld [vmem:[%s0 + $0x58] sm:$0xff]
  %v26 = vld [vmem:[%s0 + $0x60] sm:$0xff]
  %v27 = vld [vmem:[%s0 + $0x68] sm:$0xff]
  %v28 = vld [vmem:[%s0 + $0x70] sm:$0xff]
  %v29 = vld [vmem:[%s0 + $0x78] sm:$0xff]
  %v30 = vld [vmem:[%s1] sm:$0xff]
  %v31 = vld [vmem:[%s1 + $0x8] sm:$0xff]
  %v32 = vld [vmem:[%s1 + $0x10] sm:$0xff]
  %v33 = vld [vmem:[%s1 + $0x18] sm:$0xff]
  %v34 = vld [vmem:[%s2] sm:$0xff]
  %v35 = vld [vmem:[%s2 + $0x8] sm:$0xff]
  %v36 = vld [vmem:[%s2 + $0x10] sm:$0xff]
  %v37 = vld [vmem:[%s2 + $0x18] sm:$0xff]
  %v38 = vld [vmem:[%s2 + $0x20] sm:$0xff]
  %v39 = vld [vmem:[%s2 + $0x28] sm:$0xff]
  %v40 = vld [vmem:[%s2 + $0x30] sm:$0xff]
  %v41 = vld [vmem:[%s2 + $0x38] sm:$0xff]
  %v42 = vld [vmem:[%s2 + $0x40] sm:$0xff]
  %v43 = vld [vmem:[%s2 + $0x48] sm:$0xff]
  %v44 = vld [vmem:[%s2 + $0x50] sm:$0xff]
  %v45 = vld [vmem:[%s2 + $0x58] sm:$0xff]
  %v46 = vld [vmem:[%s2 + $0x60] sm:$0xff]
  %v47 = vld [vmem:[%s2 + $0x68] sm:$0xff]
  %v48 = vld [vmem:[%s2 + $0x70] sm:$0xff]
  %v49 = vld [vmem:[%s2 + $0x78] sm:$0xff]
  %vm50 = vcmask 261120
  %v52 = vsel %vm50, %v14, 0
  %v55 = vsel %vm50, %v15, 0
  %v58 = vsel %vm50, %v16, 0
  %v61 = vsel %vm50, %v17, 0
  %v64 = vsel %vm50, %v18, 0
  %v67 = vsel %vm50, %v19, 0
  %v70 = vsel %vm50, %v20, 0
  %v73 = vsel %vm50, %v21, 0
  %v76 = vsel %vm50, %v22, 0
  %v79 = vsel %vm50, %v23, 0
  %v82 = vsel %vm50, %v24, 0
  %v85 = vsel %vm50, %v25, 0
  %v88 = vsel %vm50, %v26, 0
  %v91 = vsel %vm50, %v27, 0
  %v94 = vsel %vm50, %v28, 0
  %v97 = vsel %vm50, %v29, 0
  %99 = vmatpush.msra.mxu0 0.0
  %100 = vmatpush.msra.mxu0 0.0
  %101 = vmatpush.msra.mxu0 0.0
  %102 = vmatpush.msra.mxu0 0.0
  %103 = vmatpush.msra.mxu0 0.0
  %104 = vmatpush.msra.mxu0 0.0
  %105 = vmatpush.msra.mxu0 0.0
  %106 = vmatpush.msra.mxu0 0.0
  %107 = vmatpush.msra.mxu0 0.0
  %108 = vmatpush.msra.mxu0 0.0
  %109 = vmatpush.msra.mxu0 0.0
  %110 = vmatpush.msra.mxu0 0.0
  %111 = vmatpush.msra.mxu0 %v33
  %112 = vmatpush.msra.mxu0 %v32
  %113 = vmatpush.msra.mxu0 %v31
  %114 = vmatpush.msra.mxu0 %v30
  %115 = vmatmul.f32.gmra.mxu0 %v52
  %v116 = vpop.f32.mrf.mxu0
  %v117 = vadd.f32 0.0, %v116
  %118 = vmatmul.f32.gmra.mxu0 %v55
  %v119 = vpop.f32.mrf.mxu0
  %v120 = vadd.f32 0.0, %v119
  %121 = vmatmul.f32.gmra.mxu0 %v58
  %v122 = vpop.f32.mrf.mxu0
  %v123 = vadd.f32 0.0, %v122
  %124 = vmatmul.f32.gmra.mxu0 %v61
  %v125 = vpop.f32.mrf.mxu0
  %v126 = vadd.f32 0.0, %v125
  %127 = vmatmul.f32.gmra.mxu0 %v64
  %v128 = vpop.f32.mrf.mxu0
  %v129 = vadd.f32 0.0, %v128
  %130 = vmatmul.f32.gmra.mxu0 %v67
  %v131 = vpop.f32.mrf.mxu0
  %v132 = vadd.f32 0.0, %v131
  %133 = vmatmul.f32.gmra.mxu0 %v70
  %v134 = vpop.f32.mrf.mxu0
  %v135 = vadd.f32 0.0, %v134
  %136 = vmatmul.f32.gmra.mxu0 %v73
  %v137 = vpop.f32.mrf.mxu0
  %v138 = vadd.f32 0.0, %v137
  %139 = vmatmul.f32.gmra.mxu0 %v76
  %v140 = vpop.f32.mrf.mxu0
  %v141 = vadd.f32 0.0, %v140
  %142 = vmatmul.f32.gmra.mxu0 %v79
  %v143 = vpop.f32.mrf.mxu0
  %v144 = vadd.f32 0.0, %v143
  %145 = vmatmul.f32.gmra.mxu0 %v82
  %v146 = vpop.f32.mrf.mxu0
  %v147 = vadd.f32 0.0, %v146
  %148 = vmatmul.f32.gmra.mxu0 %v85
  %v149 = vpop.f32.mrf.mxu0
  %v150 = vadd.f32 0.0, %v149
  %151 = vmatmul.f32.gmra.mxu0 %v88
  %v152 = vpop.f32.mrf.mxu0
  %v153 = vadd.f32 0.0, %v152
  %154 = vmatmul.f32.gmra.mxu0 %v91
  %v155 = vpop.f32.mrf.mxu0
  %v156 = vadd.f32 0.0, %v155
  %157 = vmatmul.f32.gmra.mxu0 %v94
  %v158 = vpop.f32.mrf.mxu0
  %v159 = vadd.f32 0.0, %v158
  %160 = vmatmul.f32.gmra.mxu0 %v97
  %v161 = vpop.f32.mrf.mxu0
  %v162 = vadd.f32 0.0, %v161
  %163 = vdwg.mxu0
  %180 = vrot.lane.b32.xlu0 %v117, 64
  %v181 = vpop.permute.xlu0 %180
  %182 = vrot.lane.b32.xlu0 %v120, 64
  %v183 = vpop.permute.xlu0 %182
  %184 = vrot.lane.b32.xlu0 %v123, 64
  %v185 = vpop.permute.xlu0 %184
  %186 = vrot.lane.b32.xlu0 %v126, 64
  %v187 = vpop.permute.xlu0 %186
  %188 = vrot.lane.b32.xlu0 %v129, 64
  %v189 = vpop.permute.xlu0 %188
  %190 = vrot.lane.b32.xlu0 %v132, 64
  %v191 = vpop.permute.xlu0 %190
  %192 = vrot.lane.b32.xlu0 %v135, 64
  %v193 = vpop.permute.xlu0 %192
  %194 = vrot.lane.b32.xlu0 %v138, 64
  %v195 = vpop.permute.xlu0 %194
  %196 = vrot.lane.b32.xlu0 %v141, 64
  %v197 = vpop.permute.xlu0 %196
  %198 = vrot.lane.b32.xlu0 %v144, 64
  %v199 = vpop.permute.xlu0 %198
  %200 = vrot.lane.b32.xlu0 %v147, 64
  %v201 = vpop.permute.xlu0 %200
  %202 = vrot.lane.b32.xlu0 %v150, 64
  %v203 = vpop.permute.xlu0 %202
  %204 = vrot.lane.b32.xlu0 %v153, 64
  %v205 = vpop.permute.xlu0 %204
  %206 = vrot.lane.b32.xlu0 %v156, 64
  %v207 = vpop.permute.xlu0 %206
  %208 = vrot.lane.b32.xlu0 %v159, 64
  %v209 = vpop.permute.xlu0 %208
  %210 = vrot.lane.b32.xlu0 %v162, 64
  %v211 = vpop.permute.xlu0 %210
  %228 = vxpose.xlu0.b32.start [1/16] %v181, 128
  %229 = vxpose.xlu0.b32.cont [2/16] %v183, 128
  %230 = vxpose.xlu0.b32.cont [3/16] %v185, 128
  %231 = vxpose.xlu0.b32.cont [4/16] %v187, 128
  %232 = vxpose.xlu0.b32.cont [5/16] %v189, 128
  %233 = vxpose.xlu0.b32.cont [6/16] %v191, 128
  %234 = vxpose.xlu0.b32.cont [7/16] %v193, 128
  %235 = vxpose.xlu0.b32.cont [8/16] %v195, 128
  %236 = vxpose.xlu0.b32.cont [9/16] %v197, 128
  %237 = vxpose.xlu0.b32.cont [10/16] %v199, 128
  %238 = vxpose.xlu0.b32.cont [11/16] %v201, 128
  %239 = vxpose.xlu0.b32.cont [12/16] %v203, 128
  %240 = vxpose.xlu0.b32.cont [13/16] %v205, 128
  %241 = vxpose.xlu0.b32.cont [14/16] %v207, 128
  %242 = vxpose.xlu0.b32.cont [15/16] %v209, 128
  %243 = vxpose.xlu0.b32.end [16/16] %v211, 128
  %v244 = vpop.trf.xlu0
  %v245 = vpop.trf.xlu0
  %v246 = vpop.trf.xlu0
  %v247 = vpop.trf.xlu0
  %v248 = vpop.trf.xlu0
  %v249 = vpop.trf.xlu0
  %v250 = vpop.trf.xlu0
  %v251 = vpop.trf.xlu0
  %v252 = vpop.trf.xlu0
  %v253 = vpop.trf.xlu0
  %v254 = vpop.trf.xlu0
  %v255 = vpop.trf.xlu0
  %v256 = vpop.trf.xlu0
  %v257 = vpop.trf.xlu0
  %v258 = vpop.trf.xlu0
  %v259 = vpop.trf.xlu0
  %vm260 = vcmp.gt.f32.partialorder %v34, 0.0
  %vm261 = vcmp.gt.f32.partialorder %v35, 0.0
  %vm262 = vcmp.gt.f32.partialorder %v36, 0.0
  %vm263 = vcmp.gt.f32.partialorder %v37, 0.0
  %vm264 = vcmp.gt.f32.partialorder %v38, 0.0
  %vm265 = vcmp.gt.f32.partialorder %v39, 0.0
  %vm266 = vcmp.gt.f32.partialorder %v40, 0.0
  %vm267 = vcmp.gt.f32.partialorder %v41, 0.0
  %vm268 = vcmp.gt.f32.partialorder %v42, 0.0
  %vm269 = vcmp.gt.f32.partialorder %v43, 0.0
  %vm270 = vcmp.gt.f32.partialorder %v44, 0.0
  %vm271 = vcmp.gt.f32.partialorder %v45, 0.0
  %vm272 = vcmp.gt.f32.partialorder %v46, 0.0
  %vm273 = vcmp.gt.f32.partialorder %v47, 0.0
  %vm274 = vcmp.gt.f32.partialorder %v48, 0.0
  %vm275 = vcmp.gt.f32.partialorder %v49, 0.0
  %276 = vset.pattern.permute.xlu0 68
  %277 = vperm.xlu0 %276, %v117
  %v278 = vpop.permute.xlu0 %277
  %280 = vset.pattern.permute.xlu0 68
  %281 = vperm.xlu0 %280, %v120
  %v282 = vpop.permute.xlu0 %281
  %284 = vset.pattern.permute.xlu0 68
  %285 = vperm.xlu0 %284, %v123
  %v286 = vpop.permute.xlu0 %285
  %288 = vset.pattern.permute.xlu0 68
  %289 = vperm.xlu0 %288, %v126
  %v290 = vpop.permute.xlu0 %289
  %292 = vset.pattern.permute.xlu0 68
  %293 = vperm.xlu0 %292, %v129
  %v294 = vpop.permute.xlu0 %293
  %296 = vset.pattern.permute.xlu0 68
  %297 = vperm.xlu0 %296, %v132
  %v298 = vpop.permute.xlu0 %297
  %300 = vset.pattern.permute.xlu0 68
  %301 = vperm.xlu0 %300, %v135
  %v302 = vpop.permute.xlu0 %301
  %304 = vset.pattern.permute.xlu0 68
  %305 = vperm.xlu0 %304, %v138
  %v306 = vpop.permute.xlu0 %305
  %308 = vset.pattern.permute.xlu0 68
  %309 = vperm.xlu0 %308, %v141
  %v310 = vpop.permute.xlu0 %309
  %312 = vset.pattern.permute.xlu0 68
  %313 = vperm.xlu0 %312, %v144
  %v314 = vpop.permute.xlu0 %313
  %316 = vset.pattern.permute.xlu0 68
  %317 = vperm.xlu0 %316, %v147
  %v318 = vpop.permute.xlu0 %317
  %320 = vset.pattern.permute.xlu0 68
  %321 = vperm.xlu0 %320, %v150
  %v322 = vpop.permute.xlu0 %321
  %324 = vset.pattern.permute.xlu0 68
  %325 = vperm.xlu0 %324, %v153
  %v326 = vpop.permute.xlu0 %325
  %328 = vset.pattern.permute.xlu0 68
  %329 = vperm.xlu0 %328, %v156
  %v330 = vpop.permute.xlu0 %329
  %332 = vset.pattern.permute.xlu0 68
  %333 = vperm.xlu0 %332, %v159
  %v334 = vpop.permute.xlu0 %333
  %336 = vset.pattern.permute.xlu0 68
  %337 = vperm.xlu0 %336, %v162
  %v338 = vpop.permute.xlu0 %337
  %v340 = vperm.slane %v244, 0
  %v341 = vadd.f32 %v278, %v340
  %v342 = vadd.f32 %v282, %v340
  %v343 = vadd.f32 %v286, %v340
  %v344 = vadd.f32 %v290, %v340
  %v345 = vadd.f32 %v294, %v340
  %v346 = vadd.f32 %v298, %v340
  %v347 = vadd.f32 %v302, %v340
  %v348 = vadd.f32 %v306, %v340
  %v349 = vadd.f32 %v310, %v340
  %v350 = vadd.f32 %v314, %v340
  %v351 = vadd.f32 %v318, %v340
  %v352 = vadd.f32 %v322, %v340
  %v353 = vadd.f32 %v326, %v340
  %v354 = vadd.f32 %v330, %v340
  %v355 = vadd.f32 %v334, %v340
  %v356 = vadd.f32 %v338, %v340
  %v357 = vmul.f32 %v341, 0.2
  %v358 = vmul.f32 %v342, 0.2
  %v359 = vmul.f32 %v343, 0.2
  %v360 = vmul.f32 %v344, 0.2
  %v361 = vmul.f32 %v345, 0.2
  %v362 = vmul.f32 %v346, 0.2
  %v363 = vmul.f32 %v347, 0.2
  %v364 = vmul.f32 %v348, 0.2
  %v365 = vmul.f32 %v349, 0.2
  %v366 = vmul.f32 %v350, 0.2
  %v367 = vmul.f32 %v351, 0.2
  %v368 = vmul.f32 %v352, 0.2
  %v369 = vmul.f32 %v353, 0.2
  %v370 = vmul.f32 %v354, 0.2
  %v371 = vmul.f32 %v355, 0.2
  %v372 = vmul.f32 %v356, 0.2
  %v373 = vmax.f32 %v341, %v357
  %v374 = vmax.f32 %v342, %v358
  %v375 = vmax.f32 %v343, %v359
  %v376 = vmax.f32 %v344, %v360
  %v377 = vmax.f32 %v345, %v361
  %v378 = vmax.f32 %v346, %v362
  %v379 = vmax.f32 %v347, %v363
  %v380 = vmax.f32 %v348, %v364
  %v381 = vmax.f32 %v349, %v365
  %v382 = vmax.f32 %v350, %v366
  %v383 = vmax.f32 %v351, %v367
  %v384 = vmax.f32 %v352, %v368
  %v385 = vmax.f32 %v353, %v369
  %v386 = vmax.f32 %v354, %v370
  %v387 = vmax.f32 %v355, %v371
  %v388 = vmax.f32 %v356, %v372
  %v389 = vmul.f32 %v373, 1.442695
  %v390 = vpow.pop %v389
  %v391 = vmul.f32 %v374, 1.442695
  %v392 = vpow.pop %v391
  %v393 = vmul.f32 %v375, 1.442695
  %v394 = vpow.pop %v393
  %v395 = vmul.f32 %v376, 1.442695
  %v396 = vpow.pop %v395
  %v397 = vmul.f32 %v377, 1.442695
  %v398 = vpow.pop %v397
  %v399 = vmul.f32 %v378, 1.442695
  %v400 = vpow.pop %v399
  %v401 = vmul.f32 %v379, 1.442695
  %v402 = vpow.pop %v401
  %v403 = vmul.f32 %v380, 1.442695
  %v404 = vpow.pop %v403
  %v405 = vmul.f32 %v381, 1.442695
  %v406 = vpow.pop %v405
  %v407 = vmul.f32 %v382, 1.442695
  %v408 = vpow.pop %v407
  %v409 = vmul.f32 %v383, 1.442695
  %v410 = vpow.pop %v409
  %v411 = vmul.f32 %v384, 1.442695
  %v412 = vpow.pop %v411
  %v413 = vmul.f32 %v385, 1.442695
  %v414 = vpow.pop %v413
  %v415 = vmul.f32 %v386, 1.442695
  %v416 = vpow.pop %v415
  %v417 = vmul.f32 %v387, 1.442695
  %v418 = vpow.pop %v417
  %v419 = vmul.f32 %v388, 1.442695
  %v420 = vpow.pop %v419
  %v421 = vmin.f32 %v390, 10.0
  %v422 = vmin.f32 %v392, 10.0
  %v423 = vmin.f32 %v394, 10.0
  %v424 = vmin.f32 %v396, 10.0
  %v425 = vmin.f32 %v398, 10.0
  %v426 = vmin.f32 %v400, 10.0
  %v427 = vmin.f32 %v402, 10.0
  %v428 = vmin.f32 %v404, 10.0
  %v429 = vmin.f32 %v406, 10.0
  %v430 = vmin.f32 %v408, 10.0
  %v431 = vmin.f32 %v410, 10.0
  %v432 = vmin.f32 %v412, 10.0
  %v433 = vmin.f32 %v414, 10.0
  %v434 = vmin.f32 %v416, 10.0
  %v435 = vmin.f32 %v418, 10.0
  %v436 = vmin.f32 %v420, 10.0
  %v437 = vsel %vm260, %v421, 0.0
  %v438 = vsel %vm261, %v422, 0.0
  %v439 = vsel %vm262, %v423, 0.0
  %v440 = vsel %vm263, %v424, 0.0
  %v441 = vsel %vm264, %v425, 0.0
  %v442 = vsel %vm265, %v426, 0.0
  %v443 = vsel %vm266, %v427, 0.0
  %v444 = vsel %vm267, %v428, 0.0
  %v445 = vsel %vm268, %v429, 0.0
  %v446 = vsel %vm269, %v430, 0.0
  %v447 = vsel %vm270, %v431, 0.0
  %v448 = vsel %vm271, %v432, 0.0
  %v449 = vsel %vm272, %v433, 0.0
  %v450 = vsel %vm273, %v434, 0.0
  %v451 = vsel %vm274, %v435, 0.0
  %v452 = vsel %vm275, %v436, 0.0
  %vm453 = vcmask 130048
  %v454 = vsel %vm453, %v117, 1.0
  %v455 = vsel %vm453, %v120, 1.0
  %v456 = vsel %vm453, %v123, 1.0
  %v457 = vsel %vm453, %v126, 1.0
  %v458 = vsel %vm453, %v129, 1.0
  %v459 = vsel %vm453, %v132, 1.0
  %v460 = vsel %vm453, %v135, 1.0
  %v461 = vsel %vm453, %v138, 1.0
  %v462 = vsel %vm453, %v141, 1.0
  %v463 = vsel %vm453, %v144, 1.0
  %v464 = vsel %vm453, %v147, 1.0
  %v465 = vsel %vm453, %v150, 1.0
  %v466 = vsel %vm453, %v153, 1.0
  %v467 = vsel %vm453, %v156, 1.0
  %v468 = vsel %vm453, %v159, 1.0
  %v469 = vsel %vm453, %v162, 1.0
  %470 = vmatpush.msra.mxu0 %v469
  %471 = vmatpush.msra.mxu0 %v468
  %472 = vmatpush.msra.mxu0 %v467
  %473 = vmatpush.msra.mxu0 %v466
  %474 = vmatpush.msra.mxu0 %v465
  %475 = vmatpush.msra.mxu0 %v464
  %476 = vmatpush.msra.mxu0 %v463
  %477 = vmatpush.msra.mxu0 %v462
  %478 = vmatpush.msra.mxu0 %v461
  %479 = vmatpush.msra.mxu0 %v460
  %480 = vmatpush.msra.mxu0 %v459
  %481 = vmatpush.msra.mxu0 %v458
  %482 = vmatpush.msra.mxu0 %v457
  %483 = vmatpush.msra.mxu0 %v456
  %484 = vmatpush.msra.mxu0 %v455
  %485 = vmatpush.msra.mxu0 %v454
  %486 = vmatmul.f32.gmra.mxu0 %v437
  %v487 = vpop.f32.mrf.mxu0
  %v488 = vadd.f32 0.0, %v487
  %489 = vmatmul.f32.gmra.mxu0 %v438
  %v490 = vpop.f32.mrf.mxu0
  %v491 = vadd.f32 0.0, %v490
  %492 = vmatmul.f32.gmra.mxu0 %v439
  %v493 = vpop.f32.mrf.mxu0
  %v494 = vadd.f32 0.0, %v493
  %495 = vmatmul.f32.gmra.mxu0 %v440
  %v496 = vpop.f32.mrf.mxu0
  %v497 = vadd.f32 0.0, %v496
  %498 = vmatmul.f32.gmra.mxu0 %v441
  %v499 = vpop.f32.mrf.mxu0
  %v500 = vadd.f32 0.0, %v499
  %501 = vmatmul.f32.gmra.mxu0 %v442
  %v502 = vpop.f32.mrf.mxu0
  %v503 = vadd.f32 0.0, %v502
  %504 = vmatmul.f32.gmra.mxu0 %v443
  %v505 = vpop.f32.mrf.mxu0
  %v506 = vadd.f32 0.0, %v505
  %507 = vmatmul.f32.gmra.mxu0 %v444
  %v508 = vpop.f32.mrf.mxu0
  %v509 = vadd.f32 0.0, %v508
  %510 = vmatmul.f32.gmra.mxu0 %v445
  %v511 = vpop.f32.mrf.mxu0
  %v512 = vadd.f32 0.0, %v511
  %513 = vmatmul.f32.gmra.mxu0 %v446
  %v514 = vpop.f32.mrf.mxu0
  %v515 = vadd.f32 0.0, %v514
  %516 = vmatmul.f32.gmra.mxu0 %v447
  %v517 = vpop.f32.mrf.mxu0
  %v518 = vadd.f32 0.0, %v517
  %519 = vmatmul.f32.gmra.mxu0 %v448
  %v520 = vpop.f32.mrf.mxu0
  %v521 = vadd.f32 0.0, %v520
  %522 = vmatmul.f32.gmra.mxu0 %v449
  %v523 = vpop.f32.mrf.mxu0
  %v524 = vadd.f32 0.0, %v523
  %525 = vmatmul.f32.gmra.mxu0 %v450
  %v526 = vpop.f32.mrf.mxu0
  %v527 = vadd.f32 0.0, %v526
  %528 = vmatmul.f32.gmra.mxu0 %v451
  %v529 = vpop.f32.mrf.mxu0
  %v530 = vadd.f32 0.0, %v529
  %531 = vmatmul.f32.gmra.mxu0 %v452
  %v532 = vpop.f32.mrf.mxu0
  %v533 = vadd.f32 0.0, %v532
  %534 = vdwg.mxu0
  %536 = vset.pattern.permute.xlu0 16
  %537 = vperm.xlu0 %536, %v488
  %v538 = vpop.permute.xlu0 %537
  %541 = vset.pattern.permute.xlu0 16
  %542 = vperm.xlu0 %541, %v491
  %v543 = vpop.permute.xlu0 %542
  %546 = vset.pattern.permute.xlu0 16
  %547 = vperm.xlu0 %546, %v494
  %v548 = vpop.permute.xlu0 %547
  %551 = vset.pattern.permute.xlu0 16
  %552 = vperm.xlu0 %551, %v497
  %v553 = vpop.permute.xlu0 %552
  %556 = vset.pattern.permute.xlu0 16
  %557 = vperm.xlu0 %556, %v500
  %v558 = vpop.permute.xlu0 %557
  %561 = vset.pattern.permute.xlu0 16
  %562 = vperm.xlu0 %561, %v503
  %v563 = vpop.permute.xlu0 %562
  %566 = vset.pattern.permute.xlu0 16
  %567 = vperm.xlu0 %566, %v506
  %v568 = vpop.permute.xlu0 %567
  %571 = vset.pattern.permute.xlu0 16
  %572 = vperm.xlu0 %571, %v509
  %v573 = vpop.permute.xlu0 %572
  %576 = vset.pattern.permute.xlu0 16
  %577 = vperm.xlu0 %576, %v512
  %v578 = vpop.permute.xlu0 %577
  %581 = vset.pattern.permute.xlu0 16
  %582 = vperm.xlu0 %581, %v515
  %v583 = vpop.permute.xlu0 %582
  %586 = vset.pattern.permute.xlu0 16
  %587 = vperm.xlu0 %586, %v518
  %v588 = vpop.permute.xlu0 %587
  %591 = vset.pattern.permute.xlu0 16
  %592 = vperm.xlu0 %591, %v521
  %v593 = vpop.permute.xlu0 %592
  %596 = vset.pattern.permute.xlu0 16
  %597 = vperm.xlu0 %596, %v524
  %v598 = vpop.permute.xlu0 %597
  %601 = vset.pattern.permute.xlu0 16
  %602 = vperm.xlu0 %601, %v527
  %v603 = vpop.permute.xlu0 %602
  %606 = vset.pattern.permute.xlu0 16
  %607 = vperm.xlu0 %606, %v530
  %v608 = vpop.permute.xlu0 %607
  %611 = vset.pattern.permute.xlu0 16
  %612 = vperm.xlu0 %611, %v533
  %v613 = vpop.permute.xlu0 %612
  %v615 = vrcp.pop %v538
  %v616 = vmul.f32 %v538, %v615
  %v617 = vsub.f32 1.0, %v616
  %v618 = vmul.f32 %v615, %v617
  %v619 = vadd.f32 %v615, %v618
  %vm620 = vweird.f32 %v538
  %vm621 = vweird.f32 %v615
  %vm622 = vmor %vm620, %vm621
  %v623 = vsel %vm622, %v615, %v619
  %v624 = vand.u32 2147483647, %v538
  %vm625 = vcmp.eq.f32.partialorder %v624, 8.507059e+37
  %v626 = vand.u32 %v538, 2147483648
  %v627 = vor.u32 1.1754944e-38, %v626
  %v628 = vsel %vm625, %v627, %v623
  %v629 = vmul.f32 %v488, %v628
  %v630 = vrcp.pop %v543
  %v631 = vmul.f32 %v543, %v630
  %v632 = vsub.f32 1.0, %v631
  %v633 = vmul.f32 %v630, %v632
  %v634 = vadd.f32 %v630, %v633
  %vm635 = vweird.f32 %v543
  %vm636 = vweird.f32 %v630
  %vm637 = vmor %vm635, %vm636
  %v638 = vsel %vm637, %v630, %v634
  %v639 = vand.u32 2147483647, %v543
  %vm640 = vcmp.eq.f32.partialorder %v639, 8.507059e+37
  %v641 = vand.u32 %v543, 2147483648
  %v642 = vor.u32 1.1754944e-38, %v641
  %v643 = vsel %vm640, %v642, %v638
  %v644 = vmul.f32 %v491, %v643
  %v645 = vrcp.pop %v548
  %v646 = vmul.f32 %v548, %v645
  %v647 = vsub.f32 1.0, %v646
  %v648 = vmul.f32 %v645, %v647
  %v649 = vadd.f32 %v645, %v648
  %vm650 = vweird.f32 %v548
  %vm651 = vweird.f32 %v645
  %vm652 = vmor %vm650, %vm651
  %v653 = vsel %vm652, %v645, %v649
  %v654 = vand.u32 2147483647, %v548
  %vm655 = vcmp.eq.f32.partialorder %v654, 8.507059e+37
  %v656 = vand.u32 %v548, 2147483648
  %v657 = vor.u32 1.1754944e-38, %v656
  %v658 = vsel %vm655, %v657, %v653
  %v659 = vmul.f32 %v494, %v658
  %v660 = vrcp.pop %v553
  %v661 = vmul.f32 %v553, %v660
  %v662 = vsub.f32 1.0, %v661
  %v663 = vmul.f32 %v660, %v662
  %v664 = vadd.f32 %v660, %v663
  %vm665 = vweird.f32 %v553
  %vm666 = vweird.f32 %v660
  %vm667 = vmor %vm665, %vm666
  %v668 = vsel %vm667, %v660, %v664
  %v669 = vand.u32 2147483647, %v553
  %vm670 = vcmp.eq.f32.partialorder %v669, 8.507059e+37
  %v671 = vand.u32 %v553, 2147483648
  %v672 = vor.u32 1.1754944e-38, %v671
  %v673 = vsel %vm670, %v672, %v668
  %v674 = vmul.f32 %v497, %v673
  %v675 = vrcp.pop %v558
  %v676 = vmul.f32 %v558, %v675
  %v677 = vsub.f32 1.0, %v676
  %v678 = vmul.f32 %v675, %v677
  %v679 = vadd.f32 %v675, %v678
  %vm680 = vweird.f32 %v558
  %vm681 = vweird.f32 %v675
  %vm682 = vmor %vm680, %vm681
  %v683 = vsel %vm682, %v675, %v679
  %v684 = vand.u32 2147483647, %v558
  %vm685 = vcmp.eq.f32.partialorder %v684, 8.507059e+37
  %v686 = vand.u32 %v558, 2147483648
  %v687 = vor.u32 1.1754944e-38, %v686
  %v688 = vsel %vm685, %v687, %v683
  %v689 = vmul.f32 %v500, %v688
  %v690 = vrcp.pop %v563
  %v691 = vmul.f32 %v563, %v690
  %v692 = vsub.f32 1.0, %v691
  %v693 = vmul.f32 %v690, %v692
  %v694 = vadd.f32 %v690, %v693
  %vm695 = vweird.f32 %v563
  %vm696 = vweird.f32 %v690
  %vm697 = vmor %vm695, %vm696
  %v698 = vsel %vm697, %v690, %v694
  %v699 = vand.u32 2147483647, %v563
  %vm700 = vcmp.eq.f32.partialorder %v699, 8.507059e+37
  %v701 = vand.u32 %v563, 2147483648
  %v702 = vor.u32 1.1754944e-38, %v701
  %v703 = vsel %vm700, %v702, %v698
  %v704 = vmul.f32 %v503, %v703
  %v705 = vrcp.pop %v568
  %v706 = vmul.f32 %v568, %v705
  %v707 = vsub.f32 1.0, %v706
  %v708 = vmul.f32 %v705, %v707
  %v709 = vadd.f32 %v705, %v708
  %vm710 = vweird.f32 %v568
  %vm711 = vweird.f32 %v705
  %vm712 = vmor %vm710, %vm711
  %v713 = vsel %vm712, %v705, %v709
  %v714 = vand.u32 2147483647, %v568
  %vm715 = vcmp.eq.f32.partialorder %v714, 8.507059e+37
  %v716 = vand.u32 %v568, 2147483648
  %v717 = vor.u32 1.1754944e-38, %v716
  %v718 = vsel %vm715, %v717, %v713
  %v719 = vmul.f32 %v506, %v718
  %v720 = vrcp.pop %v573
  %v721 = vmul.f32 %v573, %v720
  %v722 = vsub.f32 1.0, %v721
  %v723 = vmul.f32 %v720, %v722
  %v724 = vadd.f32 %v720, %v723
  %vm725 = vweird.f32 %v573
  %vm726 = vweird.f32 %v720
  %vm727 = vmor %vm725, %vm726
  %v728 = vsel %vm727, %v720, %v724
  %v729 = vand.u32 2147483647, %v573
  %vm730 = vcmp.eq.f32.partialorder %v729, 8.507059e+37
  %v731 = vand.u32 %v573, 2147483648
  %v732 = vor.u32 1.1754944e-38, %v731
  %v733 = vsel %vm730, %v732, %v728
  %v734 = vmul.f32 %v509, %v733
  %v735 = vrcp.pop %v578
  %v736 = vmul.f32 %v578, %v735
  %v737 = vsub.f32 1.0, %v736
  %v738 = vmul.f32 %v735, %v737
  %v739 = vadd.f32 %v735, %v738
  %vm740 = vweird.f32 %v578
  %vm741 = vweird.f32 %v735
  %vm742 = vmor %vm740, %vm741
  %v743 = vsel %vm742, %v735, %v739
  %v744 = vand.u32 2147483647, %v578
  %vm745 = vcmp.eq.f32.partialorder %v744, 8.507059e+37
  %v746 = vand.u32 %v578, 2147483648
  %v747 = vor.u32 1.1754944e-38, %v746
  %v748 = vsel %vm745, %v747, %v743
  %v749 = vmul.f32 %v512, %v748
  %v750 = vrcp.pop %v583
  %v751 = vmul.f32 %v583, %v750
  %v752 = vsub.f32 1.0, %v751
  %v753 = vmul.f32 %v750, %v752
  %v754 = vadd.f32 %v750, %v753
  %vm755 = vweird.f32 %v583
  %vm756 = vweird.f32 %v750
  %vm757 = vmor %vm755, %vm756
  %v758 = vsel %vm757, %v750, %v754
  %v759 = vand.u32 2147483647, %v583
  %vm760 = vcmp.eq.f32.partialorder %v759, 8.507059e+37
  %v761 = vand.u32 %v583, 2147483648
  %v762 = vor.u32 1.1754944e-38, %v761
  %v763 = vsel %vm760, %v762, %v758
  %v764 = vmul.f32 %v515, %v763
  %v765 = vrcp.pop %v588
  %v766 = vmul.f32 %v588, %v765
  %v767 = vsub.f32 1.0, %v766
  %v768 = vmul.f32 %v765, %v767
  %v769 = vadd.f32 %v765, %v768
  %vm770 = vweird.f32 %v588
  %vm771 = vweird.f32 %v765
  %vm772 = vmor %vm770, %vm771
  %v773 = vsel %vm772, %v765, %v769
  %v774 = vand.u32 2147483647, %v588
  %vm775 = vcmp.eq.f32.partialorder %v774, 8.507059e+37
  %v776 = vand.u32 %v588, 2147483648
  %v777 = vor.u32 1.1754944e-38, %v776
  %v778 = vsel %vm775, %v777, %v773
  %v779 = vmul.f32 %v518, %v778
  %v780 = vrcp.pop %v593
  %v781 = vmul.f32 %v593, %v780
  %v782 = vsub.f32 1.0, %v781
  %v783 = vmul.f32 %v780, %v782
  %v784 = vadd.f32 %v780, %v783
  %vm785 = vweird.f32 %v593
  %vm786 = vweird.f32 %v780
  %vm787 = vmor %vm785, %vm786
  %v788 = vsel %vm787, %v780, %v784
  %v789 = vand.u32 2147483647, %v593
  %vm790 = vcmp.eq.f32.partialorder %v789, 8.507059e+37
  %v791 = vand.u32 %v593, 2147483648
  %v792 = vor.u32 1.1754944e-38, %v791
  %v793 = vsel %vm790, %v792, %v788
  %v794 = vmul.f32 %v521, %v793
  %v795 = vrcp.pop %v598
  %v796 = vmul.f32 %v598, %v795
  %v797 = vsub.f32 1.0, %v796
  %v798 = vmul.f32 %v795, %v797
  %v799 = vadd.f32 %v795, %v798
  %vm800 = vweird.f32 %v598
  %vm801 = vweird.f32 %v795
  %vm802 = vmor %vm800, %vm801
  %v803 = vsel %vm802, %v795, %v799
  %v804 = vand.u32 2147483647, %v598
  %vm805 = vcmp.eq.f32.partialorder %v804, 8.507059e+37
  %v806 = vand.u32 %v598, 2147483648
  %v807 = vor.u32 1.1754944e-38, %v806
  %v808 = vsel %vm805, %v807, %v803
  %v809 = vmul.f32 %v524, %v808
  %v810 = vrcp.pop %v603
  %v811 = vmul.f32 %v603, %v810
  %v812 = vsub.f32 1.0, %v811
  %v813 = vmul.f32 %v810, %v812
  %v814 = vadd.f32 %v810, %v813
  %vm815 = vweird.f32 %v603
  %vm816 = vweird.f32 %v810
  %vm817 = vmor %vm815, %vm816
  %v818 = vsel %vm817, %v810, %v814
  %v819 = vand.u32 2147483647, %v603
  %vm820 = vcmp.eq.f32.partialorder %v819, 8.507059e+37
  %v821 = vand.u32 %v603, 2147483648
  %v822 = vor.u32 1.1754944e-38, %v821
  %v823 = vsel %vm820, %v822, %v818
  %v824 = vmul.f32 %v527, %v823
  %v825 = vrcp.pop %v608
  %v826 = vmul.f32 %v608, %v825
  %v827 = vsub.f32 1.0, %v826
  %v828 = vmul.f32 %v825, %v827
  %v829 = vadd.f32 %v825, %v828
  %vm830 = vweird.f32 %v608
  %vm831 = vweird.f32 %v825
  %vm832 = vmor %vm830, %vm831
  %v833 = vsel %vm832, %v825, %v829
  %v834 = vand.u32 2147483647, %v608
  %vm835 = vcmp.eq.f32.partialorder %v834, 8.507059e+37
  %v836 = vand.u32 %v608, 2147483648
  %v837 = vor.u32 1.1754944e-38, %v836
  %v838 = vsel %vm835, %v837, %v833
  %v839 = vmul.f32 %v530, %v838
  %v840 = vrcp.pop %v613
  %v841 = vmul.f32 %v613, %v840
  %v842 = vsub.f32 1.0, %v841
  %v843 = vmul.f32 %v840, %v842
  %v844 = vadd.f32 %v840, %v843
  %vm845 = vweird.f32 %v613
  %vm846 = vweird.f32 %v840
  %vm847 = vmor %vm845, %vm846
  %v848 = vsel %vm847, %v840, %v844
  %v849 = vand.u32 2147483647, %v613
  %vm850 = vcmp.eq.f32.partialorder %v849, 8.507059e+37
  %v851 = vand.u32 %v613, 2147483648
  %v852 = vor.u32 1.1754944e-38, %v851
  %v853 = vsel %vm850, %v852, %v848
  %v854 = vmul.f32 %v533, %v853
  %855 = vset.pattern.permute.xlu0 69
  %856 = vperm.xlu0 %855, %v117
  %v857 = vpop.permute.xlu0 %856
  %859 = vset.pattern.permute.xlu0 69
  %860 = vperm.xlu0 %859, %v120
  %v861 = vpop.permute.xlu0 %860
  %863 = vset.pattern.permute.xlu0 69
  %864 = vperm.xlu0 %863, %v123
  %v865 = vpop.permute.xlu0 %864
  %867 = vset.pattern.permute.xlu0 69
  %868 = vperm.xlu0 %867, %v126
  %v869 = vpop.permute.xlu0 %868
  %871 = vset.pattern.permute.xlu0 69
  %872 = vperm.xlu0 %871, %v129
  %v873 = vpop.permute.xlu0 %872
  %875 = vset.pattern.permute.xlu0 69
  %876 = vperm.xlu0 %875, %v132
  %v877 = vpop.permute.xlu0 %876
  %879 = vset.pattern.permute.xlu0 69
  %880 = vperm.xlu0 %879, %v135
  %v881 = vpop.permute.xlu0 %880
  %883 = vset.pattern.permute.xlu0 69
  %884 = vperm.xlu0 %883, %v138
  %v885 = vpop.permute.xlu0 %884
  %887 = vset.pattern.permute.xlu0 69
  %888 = vperm.xlu0 %887, %v141
  %v889 = vpop.permute.xlu0 %888
  %891 = vset.pattern.permute.xlu0 69
  %892 = vperm.xlu0 %891, %v144
  %v893 = vpop.permute.xlu0 %892
  %895 = vset.pattern.permute.xlu0 69
  %896 = vperm.xlu0 %895, %v147
  %v897 = vpop.permute.xlu0 %896
  %899 = vset.pattern.permute.xlu0 69
  %900 = vperm.xlu0 %899, %v150
  %v901 = vpop.permute.xlu0 %900
  %903 = vset.pattern.permute.xlu0 69
  %904 = vperm.xlu0 %903, %v153
  %v905 = vpop.permute.xlu0 %904
  %907 = vset.pattern.permute.xlu0 69
  %908 = vperm.xlu0 %907, %v156
  %v909 = vpop.permute.xlu0 %908
  %911 = vset.pattern.permute.xlu0 69
  %912 = vperm.xlu0 %911, %v159
  %v913 = vpop.permute.xlu0 %912
  %915 = vset.pattern.permute.xlu0 69
  %916 = vperm.xlu0 %915, %v162
  %v917 = vpop.permute.xlu0 %916
  %v919 = vperm.slane %v244, 1
  %v920 = vadd.f32 %v857, %v919
  %v921 = vadd.f32 %v861, %v919
  %v922 = vadd.f32 %v865, %v919
  %v923 = vadd.f32 %v869, %v919
  %v924 = vadd.f32 %v873, %v919
  %v925 = vadd.f32 %v877, %v919
  %v926 = vadd.f32 %v881, %v919
  %v927 = vadd.f32 %v885, %v919
  %v928 = vadd.f32 %v889, %v919
  %v929 = vadd.f32 %v893, %v919
  %v930 = vadd.f32 %v897, %v919
  %v931 = vadd.f32 %v901, %v919
  %v932 = vadd.f32 %v905, %v919
  %v933 = vadd.f32 %v909, %v919
  %v934 = vadd.f32 %v913, %v919
  %v935 = vadd.f32 %v917, %v919
  %v936 = vmul.f32 %v920, 0.2
  %v937 = vmul.f32 %v921, 0.2
  %v938 = vmul.f32 %v922, 0.2
  %v939 = vmul.f32 %v923, 0.2
  %v940 = vmul.f32 %v924, 0.2
  %v941 = vmul.f32 %v925, 0.2
  %v942 = vmul.f32 %v926, 0.2
  %v943 = vmul.f32 %v927, 0.2
  %v944 = vmul.f32 %v928, 0.2
  %v945 = vmul.f32 %v929, 0.2
  %v946 = vmul.f32 %v930, 0.2
  %v947 = vmul.f32 %v931, 0.2
  %v948 = vmul.f32 %v932, 0.2
  %v949 = vmul.f32 %v933, 0.2
  %v950 = vmul.f32 %v934, 0.2
  %v951 = vmul.f32 %v935, 0.2
  %v952 = vmax.f32 %v920, %v936
  %v953 = vmax.f32 %v921, %v937
  %v954 = vmax.f32 %v922, %v938
  %v955 = vmax.f32 %v923, %v939
  %v956 = vmax.f32 %v924, %v940
  %v957 = vmax.f32 %v925, %v941
  %v958 = vmax.f32 %v926, %v942
  %v959 = vmax.f32 %v927, %v943
  %v960 = vmax.f32 %v928, %v944
  %v961 = vmax.f32 %v929, %v945
  %v962 = vmax.f32 %v930, %v946
  %v963 = vmax.f32 %v931, %v947
  %v964 = vmax.f32 %v932, %v948
  %v965 = vmax.f32 %v933, %v949
  %v966 = vmax.f32 %v934, %v950
  %v967 = vmax.f32 %v935, %v951
  %v968 = vmul.f32 %v952, 1.442695
  %v969 = vpow.pop %v968
  %v970 = vmul.f32 %v953, 1.442695
  %v971 = vpow.pop %v970
  %v972 = vmul.f32 %v954, 1.442695
  %v973 = vpow.pop %v972
  %v974 = vmul.f32 %v955, 1.442695
  %v975 = vpow.pop %v974
  %v976 = vmul.f32 %v956, 1.442695
  %v977 = vpow.pop %v976
  %v978 = vmul.f32 %v957, 1.442695
  %v979 = vpow.pop %v978
  %v980 = vmul.f32 %v958, 1.442695
  %v981 = vpow.pop %v980
  %v982 = vmul.f32 %v959, 1.442695
  %v983 = vpow.pop %v982
  %v984 = vmul.f32 %v960, 1.442695
  %v985 = vpow.pop %v984
  %v986 = vmul.f32 %v961, 1.442695
  %v987 = vpow.pop %v986
  %v988 = vmul.f32 %v962, 1.442695
  %v989 = vpow.pop %v988
  %v990 = vmul.f32 %v963, 1.442695
  %v991 = vpow.pop %v990
  %v992 = vmul.f32 %v964, 1.442695
  %v993 = vpow.pop %v992
  %v994 = vmul.f32 %v965, 1.442695
  %v995 = vpow.pop %v994
  %v996 = vmul.f32 %v966, 1.442695
  %v997 = vpow.pop %v996
  %v998 = vmul.f32 %v967, 1.442695
  %v999 = vpow.pop %v998
  %v1000 = vmin.f32 %v969, 10.0
  %v1001 = vmin.f32 %v971, 10.0
  %v1002 = vmin.f32 %v973, 10.0
  %v1003 = vmin.f32 %v975, 10.0
  %v1004 = vmin.f32 %v977, 10.0
  %v1005 = vmin.f32 %v979, 10.0
  %v1006 = vmin.f32 %v981, 10.0
  %v1007 = vmin.f32 %v983, 10.0
  %v1008 = vmin.f32 %v985, 10.0
  %v1009 = vmin.f32 %v987, 10.0
  %v1010 = vmin.f32 %v989, 10.0
  %v1011 = vmin.f32 %v991, 10.0
  %v1012 = vmin.f32 %v993, 10.0
  %v1013 = vmin.f32 %v995, 10.0
  %v1014 = vmin.f32 %v997, 10.0
  %v1015 = vmin.f32 %v999, 10.0
  %v1016 = vsel %vm260, %v1000, 0.0
  %v1017 = vsel %vm261, %v1001, 0.0
  %v1018 = vsel %vm262, %v1002, 0.0
  %v1019 = vsel %vm263, %v1003, 0.0
  %v1020 = vsel %vm264, %v1004, 0.0
  %v1021 = vsel %vm265, %v1005, 0.0
  %v1022 = vsel %vm266, %v1006, 0.0
  %v1023 = vsel %vm267, %v1007, 0.0
  %v1024 = vsel %vm268, %v1008, 0.0
  %v1025 = vsel %vm269, %v1009, 0.0
  %v1026 = vsel %vm270, %v1010, 0.0
  %v1027 = vsel %vm271, %v1011, 0.0
  %v1028 = vsel %vm272, %v1012, 0.0
  %v1029 = vsel %vm273, %v1013, 0.0
  %v1030 = vsel %vm274, %v1014, 0.0
  %v1031 = vsel %vm275, %v1015, 0.0
  %1032 = vrot.lane.b32.xlu0 %v117, 112
  %v1033 = vpop.permute.xlu0 %1032
  %1034 = vrot.lane.b32.xlu0 %v120, 112
  %v1035 = vpop.permute.xlu0 %1034
  %1036 = vrot.lane.b32.xlu0 %v123, 112
  %v1037 = vpop.permute.xlu0 %1036
  %1038 = vrot.lane.b32.xlu0 %v126, 112
  %v1039 = vpop.permute.xlu0 %1038
  %1040 = vrot.lane.b32.xlu0 %v129, 112
  %v1041 = vpop.permute.xlu0 %1040
  %1042 = vrot.lane.b32.xlu0 %v132, 112
  %v1043 = vpop.permute.xlu0 %1042
  %1044 = vrot.lane.b32.xlu0 %v135, 112
  %v1045 = vpop.permute.xlu0 %1044
  %1046 = vrot.lane.b32.xlu0 %v138, 112
  %v1047 = vpop.permute.xlu0 %1046
  %1048 = vrot.lane.b32.xlu0 %v141, 112
  %v1049 = vpop.permute.xlu0 %1048
  %1050 = vrot.lane.b32.xlu0 %v144, 112
  %v1051 = vpop.permute.xlu0 %1050
  %1052 = vrot.lane.b32.xlu0 %v147, 112
  %v1053 = vpop.permute.xlu0 %1052
  %1054 = vrot.lane.b32.xlu0 %v150, 112
  %v1055 = vpop.permute.xlu0 %1054
  %1056 = vrot.lane.b32.xlu0 %v153, 112
  %v1057 = vpop.permute.xlu0 %1056
  %1058 = vrot.lane.b32.xlu0 %v156, 112
  %v1059 = vpop.permute.xlu0 %1058
  %1060 = vrot.lane.b32.xlu0 %v159, 112
  %v1061 = vpop.permute.xlu0 %1060
  %1062 = vrot.lane.b32.xlu0 %v162, 112
  %v1063 = vpop.permute.xlu0 %1062
  %v1080 = vsel %vm453, %v1033, 1.0
  %v1081 = vsel %vm453, %v1035, 1.0
  %v1082 = vsel %vm453, %v1037, 1.0
  %v1083 = vsel %vm453, %v1039, 1.0
  %v1084 = vsel %vm453, %v1041, 1.0
  %v1085 = vsel %vm453, %v1043, 1.0
  %v1086 = vsel %vm453, %v1045, 1.0
  %v1087 = vsel %vm453, %v1047, 1.0
  %v1088 = vsel %vm453, %v1049, 1.0
  %v1089 = vsel %vm453, %v1051, 1.0
  %v1090 = vsel %vm453, %v1053, 1.0
  %v1091 = vsel %vm453, %v1055, 1.0
  %v1092 = vsel %vm453, %v1057, 1.0
  %v1093 = vsel %vm453, %v1059, 1.0
  %v1094 = vsel %vm453, %v1061, 1.0
  %v1095 = vsel %vm453, %v1063, 1.0
  %1096 = vmatpush.msra.mxu0 %v1095
  %1097 = vmatpush.msra.mxu0 %v1094
  %1098 = vmatpush.msra.mxu0 %v1093
  %1099 = vmatpush.msra.mxu0 %v1092
  %1100 = vmatpush.msra.mxu0 %v1091
  %1101 = vmatpush.msra.mxu0 %v1090
  %1102 = vmatpush.msra.mxu0 %v1089
  %1103 = vmatpush.msra.mxu0 %v1088
  %1104 = vmatpush.msra.mxu0 %v1087
  %1105 = vmatpush.msra.mxu0 %v1086
  %1106 = vmatpush.msra.mxu0 %v1085
  %1107 = vmatpush.msra.mxu0 %v1084
  %1108 = vmatpush.msra.mxu0 %v1083
  %1109 = vmatpush.msra.mxu0 %v1082
  %1110 = vmatpush.msra.mxu0 %v1081
  %1111 = vmatpush.msra.mxu0 %v1080
  %1112 = vmatmul.f32.gmra.mxu0 %v1016
  %v1113 = vpop.f32.mrf.mxu0
  %v1114 = vadd.f32 0.0, %v1113
  %1115 = vmatmul.f32.gmra.mxu0 %v1017
  %v1116 = vpop.f32.mrf.mxu0
  %v1117 = vadd.f32 0.0, %v1116
  %1118 = vmatmul.f32.gmra.mxu0 %v1018
  %v1119 = vpop.f32.mrf.mxu0
  %v1120 = vadd.f32 0.0, %v1119
  %1121 = vmatmul.f32.gmra.mxu0 %v1019
  %v1122 = vpop.f32.mrf.mxu0
  %v1123 = vadd.f32 0.0, %v1122
  %1124 = vmatmul.f32.gmra.mxu0 %v1020
  %v1125 = vpop.f32.mrf.mxu0
  %v1126 = vadd.f32 0.0, %v1125
  %1127 = vmatmul.f32.gmra.mxu0 %v1021
  %v1128 = vpop.f32.mrf.mxu0
  %v1129 = vadd.f32 0.0, %v1128
  %1130 = vmatmul.f32.gmra.mxu0 %v1022
  %v1131 = vpop.f32.mrf.mxu0
  %v1132 = vadd.f32 0.0, %v1131
  %1133 = vmatmul.f32.gmra.mxu0 %v1023
  %v1134 = vpop.f32.mrf.mxu0
  %v1135 = vadd.f32 0.0, %v1134
  %1136 = vmatmul.f32.gmra.mxu0 %v1024
  %v1137 = vpop.f32.mrf.mxu0
  %v1138 = vadd.f32 0.0, %v1137
  %1139 = vmatmul.f32.gmra.mxu0 %v1025
  %v1140 = vpop.f32.mrf.mxu0
  %v1141 = vadd.f32 0.0, %v1140
  %1142 = vmatmul.f32.gmra.mxu0 %v1026
  %v1143 = vpop.f32.mrf.mxu0
  %v1144 = vadd.f32 0.0, %v1143
  %1145 = vmatmul.f32.gmra.mxu0 %v1027
  %v1146 = vpop.f32.mrf.mxu0
  %v1147 = vadd.f32 0.0, %v1146
  %1148 = vmatmul.f32.gmra.mxu0 %v1028
  %v1149 = vpop.f32.mrf.mxu0
  %v1150 = vadd.f32 0.0, %v1149
  %1151 = vmatmul.f32.gmra.mxu0 %v1029
  %v1152 = vpop.f32.mrf.mxu0
  %v1153 = vadd.f32 0.0, %v1152
  %1154 = vmatmul.f32.gmra.mxu0 %v1030
  %v1155 = vpop.f32.mrf.mxu0
  %v1156 = vadd.f32 0.0, %v1155
  %1157 = vmatmul.f32.gmra.mxu0 %v1031
  %v1158 = vpop.f32.mrf.mxu0
  %v1159 = vadd.f32 0.0, %v1158
  %1160 = vdwg.mxu0
  %1162 = vset.pattern.permute.xlu0 16
  %1163 = vperm.xlu0 %1162, %v1114
  %v1164 = vpop.permute.xlu0 %1163
  %1167 = vset.pattern.permute.xlu0 16
  %1168 = vperm.xlu0 %1167, %v1117
  %v1169 = vpop.permute.xlu0 %1168
  %1172 = vset.pattern.permute.xlu0 16
  %1173 = vperm.xlu0 %1172, %v1120
  %v1174 = vpop.permute.xlu0 %1173
  %1177 = vset.pattern.permute.xlu0 16
  %1178 = vperm.xlu0 %1177, %v1123
  %v1179 = vpop.permute.xlu0 %1178
  %1182 = vset.pattern.permute.xlu0 16
  %1183 = vperm.xlu0 %1182, %v1126
  %v1184 = vpop.permute.xlu0 %1183
  %1187 = vset.pattern.permute.xlu0 16
  %1188 = vperm.xlu0 %1187, %v1129
  %v1189 = vpop.permute.xlu0 %1188
  %1192 = vset.pattern.permute.xlu0 16
  %1193 = vperm.xlu0 %1192, %v1132
  %v1194 = vpop.permute.xlu0 %1193
  %1197 = vset.pattern.permute.xlu0 16
  %1198 = vperm.xlu0 %1197, %v1135
  %v1199 = vpop.permute.xlu0 %1198
  %1202 = vset.pattern.permute.xlu0 16
  %1203 = vperm.xlu0 %1202, %v1138
  %v1204 = vpop.permute.xlu0 %1203
  %1207 = vset.pattern.permute.xlu0 16
  %1208 = vperm.xlu0 %1207, %v1141
  %v1209 = vpop.permute.xlu0 %1208
  %1212 = vset.pattern.permute.xlu0 16
  %1213 = vperm.xlu0 %1212, %v1144
  %v1214 = vpop.permute.xlu0 %1213
  %1217 = vset.pattern.permute.xlu0 16
  %1218 = vperm.xlu0 %1217, %v1147
  %v1219 = vpop.permute.xlu0 %1218
  %1222 = vset.pattern.permute.xlu0 16
  %1223 = vperm.xlu0 %1222, %v1150
  %v1224 = vpop.permute.xlu0 %1223
  %1227 = vset.pattern.permute.xlu0 16
  %1228 = vperm.xlu0 %1227, %v1153
  %v1229 = vpop.permute.xlu0 %1228
  %1232 = vset.pattern.permute.xlu0 16
  %1233 = vperm.xlu0 %1232, %v1156
  %v1234 = vpop.permute.xlu0 %1233
  %1237 = vset.pattern.permute.xlu0 16
  %1238 = vperm.xlu0 %1237, %v1159
  %v1239 = vpop.permute.xlu0 %1238
  %v1241 = vrcp.pop %v1164
  %v1242 = vmul.f32 %v1164, %v1241
  %v1243 = vsub.f32 1.0, %v1242
  %v1244 = vmul.f32 %v1241, %v1243
  %v1245 = vadd.f32 %v1241, %v1244
  %vm1246 = vweird.f32 %v1164
  %vm1247 = vweird.f32 %v1241
  %vm1248 = vmor %vm1246, %vm1247
  %v1249 = vsel %vm1248, %v1241, %v1245
  %v1250 = vand.u32 2147483647, %v1164
  %vm1251 = vcmp.eq.f32.partialorder %v1250, 8.507059e+37
  %v1252 = vand.u32 %v1164, 2147483648
  %v1253 = vor.u32 1.1754944e-38, %v1252
  %v1254 = vsel %vm1251, %v1253, %v1249
  %v1255 = vmul.f32 %v1114, %v1254
  %v1256 = vrcp.pop %v1169
  %v1257 = vmul.f32 %v1169, %v1256
  %v1258 = vsub.f32 1.0, %v1257
  %v1259 = vmul.f32 %v1256, %v1258
  %v1260 = vadd.f32 %v1256, %v1259
  %vm1261 = vweird.f32 %v1169
  %vm1262 = vweird.f32 %v1256
  %vm1263 = vmor %vm1261, %vm1262
  %v1264 = vsel %vm1263, %v1256, %v1260
  %v1265 = vand.u32 2147483647, %v1169
  %vm1266 = vcmp.eq.f32.partialorder %v1265, 8.507059e+37
  %v1267 = vand.u32 %v1169, 2147483648
  %v1268 = vor.u32 1.1754944e-38, %v1267
  %v1269 = vsel %vm1266, %v1268, %v1264
  %v1270 = vmul.f32 %v1117, %v1269
  %v1271 = vrcp.pop %v1174
  %v1272 = vmul.f32 %v1174, %v1271
  %v1273 = vsub.f32 1.0, %v1272
  %v1274 = vmul.f32 %v1271, %v1273
  %v1275 = vadd.f32 %v1271, %v1274
  %vm1276 = vweird.f32 %v1174
  %vm1277 = vweird.f32 %v1271
  %vm1278 = vmor %vm1276, %vm1277
  %v1279 = vsel %vm1278, %v1271, %v1275
  %v1280 = vand.u32 2147483647, %v1174
  %vm1281 = vcmp.eq.f32.partialorder %v1280, 8.507059e+37
  %v1282 = vand.u32 %v1174, 2147483648
  %v1283 = vor.u32 1.1754944e-38, %v1282
  %v1284 = vsel %vm1281, %v1283, %v1279
  %v1285 = vmul.f32 %v1120, %v1284
  %v1286 = vrcp.pop %v1179
  %v1287 = vmul.f32 %v1179, %v1286
  %v1288 = vsub.f32 1.0, %v1287
  %v1289 = vmul.f32 %v1286, %v1288
  %v1290 = vadd.f32 %v1286, %v1289
  %vm1291 = vweird.f32 %v1179
  %vm1292 = vweird.f32 %v1286
  %vm1293 = vmor %vm1291, %vm1292
  %v1294 = vsel %vm1293, %v1286, %v1290
  %v1295 = vand.u32 2147483647, %v1179
  %vm1296 = vcmp.eq.f32.partialorder %v1295, 8.507059e+37
  %v1297 = vand.u32 %v1179, 2147483648
  %v1298 = vor.u32 1.1754944e-38, %v1297
  %v1299 = vsel %vm1296, %v1298, %v1294
  %v1300 = vmul.f32 %v1123, %v1299
  %v1301 = vrcp.pop %v1184
  %v1302 = vmul.f32 %v1184, %v1301
  %v1303 = vsub.f32 1.0, %v1302
  %v1304 = vmul.f32 %v1301, %v1303
  %v1305 = vadd.f32 %v1301, %v1304
  %vm1306 = vweird.f32 %v1184
  %vm1307 = vweird.f32 %v1301
  %vm1308 = vmor %vm1306, %vm1307
  %v1309 = vsel %vm1308, %v1301, %v1305
  %v1310 = vand.u32 2147483647, %v1184
  %vm1311 = vcmp.eq.f32.partialorder %v1310, 8.507059e+37
  %v1312 = vand.u32 %v1184, 2147483648
  %v1313 = vor.u32 1.1754944e-38, %v1312
  %v1314 = vsel %vm1311, %v1313, %v1309
  %v1315 = vmul.f32 %v1126, %v1314
  %v1316 = vrcp.pop %v1189
  %v1317 = vmul.f32 %v1189, %v1316
  %v1318 = vsub.f32 1.0, %v1317
  %v1319 = vmul.f32 %v1316, %v1318
  %v1320 = vadd.f32 %v1316, %v1319
  %vm1321 = vweird.f32 %v1189
  %vm1322 = vweird.f32 %v1316
  %vm1323 = vmor %vm1321, %vm1322
  %v1324 = vsel %vm1323, %v1316, %v1320
  %v1325 = vand.u32 2147483647, %v1189
  %vm1326 = vcmp.eq.f32.partialorder %v1325, 8.507059e+37
  %v1327 = vand.u32 %v1189, 2147483648
  %v1328 = vor.u32 1.1754944e-38, %v1327
  %v1329 = vsel %vm1326, %v1328, %v1324
  %v1330 = vmul.f32 %v1129, %v1329
  %v1331 = vrcp.pop %v1194
  %v1332 = vmul.f32 %v1194, %v1331
  %v1333 = vsub.f32 1.0, %v1332
  %v1334 = vmul.f32 %v1331, %v1333
  %v1335 = vadd.f32 %v1331, %v1334
  %vm1336 = vweird.f32 %v1194
  %vm1337 = vweird.f32 %v1331
  %vm1338 = vmor %vm1336, %vm1337
  %v1339 = vsel %vm1338, %v1331, %v1335
  %v1340 = vand.u32 2147483647, %v1194
  %vm1341 = vcmp.eq.f32.partialorder %v1340, 8.507059e+37
  %v1342 = vand.u32 %v1194, 2147483648
  %v1343 = vor.u32 1.1754944e-38, %v1342
  %v1344 = vsel %vm1341, %v1343, %v1339
  %v1345 = vmul.f32 %v1132, %v1344
  %v1346 = vrcp.pop %v1199
  %v1347 = vmul.f32 %v1199, %v1346
  %v1348 = vsub.f32 1.0, %v1347
  %v1349 = vmul.f32 %v1346, %v1348
  %v1350 = vadd.f32 %v1346, %v1349
  %vm1351 = vweird.f32 %v1199
  %vm1352 = vweird.f32 %v1346
  %vm1353 = vmor %vm1351, %vm1352
  %v1354 = vsel %vm1353, %v1346, %v1350
  %v1355 = vand.u32 2147483647, %v1199
  %vm1356 = vcmp.eq.f32.partialorder %v1355, 8.507059e+37
  %v1357 = vand.u32 %v1199, 2147483648
  %v1358 = vor.u32 1.1754944e-38, %v1357
  %v1359 = vsel %vm1356, %v1358, %v1354
  %v1360 = vmul.f32 %v1135, %v1359
  %v1361 = vrcp.pop %v1204
  %v1362 = vmul.f32 %v1204, %v1361
  %v1363 = vsub.f32 1.0, %v1362
  %v1364 = vmul.f32 %v1361, %v1363
  %v1365 = vadd.f32 %v1361, %v1364
  %vm1366 = vweird.f32 %v1204
  %vm1367 = vweird.f32 %v1361
  %vm1368 = vmor %vm1366, %vm1367
  %v1369 = vsel %vm1368, %v1361, %v1365
  %v1370 = vand.u32 2147483647, %v1204
  %vm1371 = vcmp.eq.f32.partialorder %v1370, 8.507059e+37
  %v1372 = vand.u32 %v1204, 2147483648
  %v1373 = vor.u32 1.1754944e-38, %v1372
  %v1374 = vsel %vm1371, %v1373, %v1369
  %v1375 = vmul.f32 %v1138, %v1374
  %v1376 = vrcp.pop %v1209
  %v1377 = vmul.f32 %v1209, %v1376
  %v1378 = vsub.f32 1.0, %v1377
  %v1379 = vmul.f32 %v1376, %v1378
  %v1380 = vadd.f32 %v1376, %v1379
  %vm1381 = vweird.f32 %v1209
  %vm1382 = vweird.f32 %v1376
  %vm1383 = vmor %vm1381, %vm1382
  %v1384 = vsel %vm1383, %v1376, %v1380
  %v1385 = vand.u32 2147483647, %v1209
  %vm1386 = vcmp.eq.f32.partialorder %v1385, 8.507059e+37
  %v1387 = vand.u32 %v1209, 2147483648
  %v1388 = vor.u32 1.1754944e-38, %v1387
  %v1389 = vsel %vm1386, %v1388, %v1384
  %v1390 = vmul.f32 %v1141, %v1389
  %v1391 = vrcp.pop %v1214
  %v1392 = vmul.f32 %v1214, %v1391
  %v1393 = vsub.f32 1.0, %v1392
  %v1394 = vmul.f32 %v1391, %v1393
  %v1395 = vadd.f32 %v1391, %v1394
  %vm1396 = vweird.f32 %v1214
  %vm1397 = vweird.f32 %v1391
  %vm1398 = vmor %vm1396, %vm1397
  %v1399 = vsel %vm1398, %v1391, %v1395
  %v1400 = vand.u32 2147483647, %v1214
  %vm1401 = vcmp.eq.f32.partialorder %v1400, 8.507059e+37
  %v1402 = vand.u32 %v1214, 2147483648
  %v1403 = vor.u32 1.1754944e-38, %v1402
  %v1404 = vsel %vm1401, %v1403, %v1399
  %v1405 = vmul.f32 %v1144, %v1404
  %v1406 = vrcp.pop %v1219
  %v1407 = vmul.f32 %v1219, %v1406
  %v1408 = vsub.f32 1.0, %v1407
  %v1409 = vmul.f32 %v1406, %v1408
  %v1410 = vadd.f32 %v1406, %v1409
  %vm1411 = vweird.f32 %v1219
  %vm1412 = vweird.f32 %v1406
  %vm1413 = vmor %vm1411, %vm1412
  %v1414 = vsel %vm1413, %v1406, %v1410
  %v1415 = vand.u32 2147483647, %v1219
  %vm1416 = vcmp.eq.f32.partialorder %v1415, 8.507059e+37
  %v1417 = vand.u32 %v1219, 2147483648
  %v1418 = vor.u32 1.1754944e-38, %v1417
  %v1419 = vsel %vm1416, %v1418, %v1414
  %v1420 = vmul.f32 %v1147, %v1419
  %v1421 = vrcp.pop %v1224
  %v1422 = vmul.f32 %v1224, %v1421
  %v1423 = vsub.f32 1.0, %v1422
  %v1424 = vmul.f32 %v1421, %v1423
  %v1425 = vadd.f32 %v1421, %v1424
  %vm1426 = vweird.f32 %v1224
  %vm1427 = vweird.f32 %v1421
  %vm1428 = vmor %vm1426, %vm1427
  %v1429 = vsel %vm1428, %v1421, %v1425
  %v1430 = vand.u32 2147483647, %v1224
  %vm1431 = vcmp.eq.f32.partialorder %v1430, 8.507059e+37
  %v1432 = vand.u32 %v1224, 2147483648
  %v1433 = vor.u32 1.1754944e-38, %v1432
  %v1434 = vsel %vm1431, %v1433, %v1429
  %v1435 = vmul.f32 %v1150, %v1434
  %v1436 = vrcp.pop %v1229
  %v1437 = vmul.f32 %v1229, %v1436
  %v1438 = vsub.f32 1.0, %v1437
  %v1439 = vmul.f32 %v1436, %v1438
  %v1440 = vadd.f32 %v1436, %v1439
  %vm1441 = vweird.f32 %v1229
  %vm1442 = vweird.f32 %v1436
  %vm1443 = vmor %vm1441, %vm1442
  %v1444 = vsel %vm1443, %v1436, %v1440
  %v1445 = vand.u32 2147483647, %v1229
  %vm1446 = vcmp.eq.f32.partialorder %v1445, 8.507059e+37
  %v1447 = vand.u32 %v1229, 2147483648
  %v1448 = vor.u32 1.1754944e-38, %v1447
  %v1449 = vsel %vm1446, %v1448, %v1444
  %v1450 = vmul.f32 %v1153, %v1449
  %v1451 = vrcp.pop %v1234
  %v1452 = vmul.f32 %v1234, %v1451
  %v1453 = vsub.f32 1.0, %v1452
  %v1454 = vmul.f32 %v1451, %v1453
  %v1455 = vadd.f32 %v1451, %v1454
  %vm1456 = vweird.f32 %v1234
  %vm1457 = vweird.f32 %v1451
  %vm1458 = vmor %vm1456, %vm1457
  %v1459 = vsel %vm1458, %v1451, %v1455
  %v1460 = vand.u32 2147483647, %v1234
  %vm1461 = vcmp.eq.f32.partialorder %v1460, 8.507059e+37
  %v1462 = vand.u32 %v1234, 2147483648
  %v1463 = vor.u32 1.1754944e-38, %v1462
  %v1464 = vsel %vm1461, %v1463, %v1459
  %v1465 = vmul.f32 %v1156, %v1464
  %v1466 = vrcp.pop %v1239
  %v1467 = vmul.f32 %v1239, %v1466
  %v1468 = vsub.f32 1.0, %v1467
  %v1469 = vmul.f32 %v1466, %v1468
  %v1470 = vadd.f32 %v1466, %v1469
  %vm1471 = vweird.f32 %v1239
  %vm1472 = vweird.f32 %v1466
  %vm1473 = vmor %vm1471, %vm1472
  %v1474 = vsel %vm1473, %v1466, %v1470
  %v1475 = vand.u32 2147483647, %v1239
  %vm1476 = vcmp.eq.f32.partialorder %v1475, 8.507059e+37
  %v1477 = vand.u32 %v1239, 2147483648
  %v1478 = vor.u32 1.1754944e-38, %v1477
  %v1479 = vsel %vm1476, %v1478, %v1474
  %v1480 = vmul.f32 %v1159, %v1479
  %1481 = vset.pattern.permute.xlu0 70
  %1482 = vperm.xlu0 %1481, %v117
  %v1483 = vpop.permute.xlu0 %1482
  %1485 = vset.pattern.permute.xlu0 70
  %1486 = vperm.xlu0 %1485, %v120
  %v1487 = vpop.permute.xlu0 %1486
  %1489 = vset.pattern.permute.xlu0 70
  %1490 = vperm.xlu0 %1489, %v123
  %v1491 = vpop.permute.xlu0 %1490
  %1493 = vset.pattern.permute.xlu0 70
  %1494 = vperm.xlu0 %1493, %v126
  %v1495 = vpop.permute.xlu0 %1494
  %1497 = vset.pattern.permute.xlu0 70
  %1498 = vperm.xlu0 %1497, %v129
  %v1499 = vpop.permute.xlu0 %1498
  %1501 = vset.pattern.permute.xlu0 70
  %1502 = vperm.xlu0 %1501, %v132
  %v1503 = vpop.permute.xlu0 %1502
  %1505 = vset.pattern.permute.xlu0 70
  %1506 = vperm.xlu0 %1505, %v135
  %v1507 = vpop.permute.xlu0 %1506
  %1509 = vset.pattern.permute.xlu0 70
  %1510 = vperm.xlu0 %1509, %v138
  %v1511 = vpop.permute.xlu0 %1510
  %1513 = vset.pattern.permute.xlu0 70
  %1514 = vperm.xlu0 %1513, %v141
  %v1515 = vpop.permute.xlu0 %1514
  %1517 = vset.pattern.permute.xlu0 70
  %1518 = vperm.xlu0 %1517, %v144
  %v1519 = vpop.permute.xlu0 %1518
  %1521 = vset.pattern.permute.xlu0 70
  %1522 = vperm.xlu0 %1521, %v147
  %v1523 = vpop.permute.xlu0 %1522
  %1525 = vset.pattern.permute.xlu0 70
  %1526 = vperm.xlu0 %1525, %v150
  %v1527 = vpop.permute.xlu0 %1526
  %1529 = vset.pattern.permute.xlu0 70
  %1530 = vperm.xlu0 %1529, %v153
  %v1531 = vpop.permute.xlu0 %1530
  %1533 = vset.pattern.permute.xlu0 70
  %1534 = vperm.xlu0 %1533, %v156
  %v1535 = vpop.permute.xlu0 %1534
  %1537 = vset.pattern.permute.xlu0 70
  %1538 = vperm.xlu0 %1537, %v159
  %v1539 = vpop.permute.xlu0 %1538
  %1541 = vset.pattern.permute.xlu0 70
  %1542 = vperm.xlu0 %1541, %v162
  %v1543 = vpop.permute.xlu0 %1542
  %v1545 = vperm.slane %v244, 2
  %v1546 = vadd.f32 %v1483, %v1545
  %v1547 = vadd.f32 %v1487, %v1545
  %v1548 = vadd.f32 %v1491, %v1545
  %v1549 = vadd.f32 %v1495, %v1545
  %v1550 = vadd.f32 %v1499, %v1545
  %v1551 = vadd.f32 %v1503, %v1545
  %v1552 = vadd.f32 %v1507, %v1545
  %v1553 = vadd.f32 %v1511, %v1545
  %v1554 = vadd.f32 %v1515, %v1545
  %v1555 = vadd.f32 %v1519, %v1545
  %v1556 = vadd.f32 %v1523, %v1545
  %v1557 = vadd.f32 %v1527, %v1545
  %v1558 = vadd.f32 %v1531, %v1545
  %v1559 = vadd.f32 %v1535, %v1545
  %v1560 = vadd.f32 %v1539, %v1545
  %v1561 = vadd.f32 %v1543, %v1545
  %v1562 = vmul.f32 %v1546, 0.2
  %v1563 = vmul.f32 %v1547, 0.2
  %v1564 = vmul.f32 %v1548, 0.2
  %v1565 = vmul.f32 %v1549, 0.2
  %v1566 = vmul.f32 %v1550, 0.2
  %v1567 = vmul.f32 %v1551, 0.2
  %v1568 = vmul.f32 %v1552, 0.2
  %v1569 = vmul.f32 %v1553, 0.2
  %v1570 = vmul.f32 %v1554, 0.2
  %v1571 = vmul.f32 %v1555, 0.2
  %v1572 = vmul.f32 %v1556, 0.2
  %v1573 = vmul.f32 %v1557, 0.2
  %v1574 = vmul.f32 %v1558, 0.2
  %v1575 = vmul.f32 %v1559, 0.2
  %v1576 = vmul.f32 %v1560, 0.2
  %v1577 = vmul.f32 %v1561, 0.2
  %v1578 = vmax.f32 %v1546, %v1562
  %v1579 = vmax.f32 %v1547, %v1563
  %v1580 = vmax.f32 %v1548, %v1564
  %v1581 = vmax.f32 %v1549, %v1565
  %v1582 = vmax.f32 %v1550, %v1566
  %v1583 = vmax.f32 %v1551, %v1567
  %v1584 = vmax.f32 %v1552, %v1568
  %v1585 = vmax.f32 %v1553, %v1569
  %v1586 = vmax.f32 %v1554, %v1570
  %v1587 = vmax.f32 %v1555, %v1571
  %v1588 = vmax.f32 %v1556, %v1572
  %v1589 = vmax.f32 %v1557, %v1573
  %v1590 = vmax.f32 %v1558, %v1574
  %v1591 = vmax.f32 %v1559, %v1575
  %v1592 = vmax.f32 %v1560, %v1576
  %v1593 = vmax.f32 %v1561, %v1577
  %v1594 = vmul.f32 %v1578, 1.442695
  %v1595 = vpow.pop %v1594
  %v1596 = vmul.f32 %v1579, 1.442695
  %v1597 = vpow.pop %v1596
  %v1598 = vmul.f32 %v1580, 1.442695
  %v1599 = vpow.pop %v1598
  %v1600 = vmul.f32 %v1581, 1.442695
  %v1601 = vpow.pop %v1600
  %v1602 = vmul.f32 %v1582, 1.442695
  %v1603 = vpow.pop %v1602
  %v1604 = vmul.f32 %v1583, 1.442695
  %v1605 = vpow.pop %v1604
  %v1606 = vmul.f32 %v1584, 1.442695
  %v1607 = vpow.pop %v1606
  %v1608 = vmul.f32 %v1585, 1.442695
  %v1609 = vpow.pop %v1608
  %v1610 = vmul.f32 %v1586, 1.442695
  %v1611 = vpow.pop %v1610
  %v1612 = vmul.f32 %v1587, 1.442695
  %v1613 = vpow.pop %v1612
  %v1614 = vmul.f32 %v1588, 1.442695
  %v1615 = vpow.pop %v1614
  %v1616 = vmul.f32 %v1589, 1.442695
  %v1617 = vpow.pop %v1616
  %v1618 = vmul.f32 %v1590, 1.442695
  %v1619 = vpow.pop %v1618
  %v1620 = vmul.f32 %v1591, 1.442695
  %v1621 = vpow.pop %v1620
  %v1622 = vmul.f32 %v1592, 1.442695
  %v1623 = vpow.pop %v1622
  %v1624 = vmul.f32 %v1593, 1.442695
  %v1625 = vpow.pop %v1624
  %v1626 = vmin.f32 %v1595, 10.0
  %v1627 = vmin.f32 %v1597, 10.0
  %v1628 = vmin.f32 %v1599, 10.0
  %v1629 = vmin.f32 %v1601, 10.0
  %v1630 = vmin.f32 %v1603, 10.0
  %v1631 = vmin.f32 %v1605, 10.0
  %v1632 = vmin.f32 %v1607, 10.0
  %v1633 = vmin.f32 %v1609, 10.0
  %v1634 = vmin.f32 %v1611, 10.0
  %v1635 = vmin.f32 %v1613, 10.0
  %v1636 = vmin.f32 %v1615, 10.0
  %v1637 = vmin.f32 %v1617, 10.0
  %v1638 = vmin.f32 %v1619, 10.0
  %v1639 = vmin.f32 %v1621, 10.0
  %v1640 = vmin.f32 %v1623, 10.0
  %v1641 = vmin.f32 %v1625, 10.0
  %v1642 = vsel %vm260, %v1626, 0.0
  %v1643 = vsel %vm261, %v1627, 0.0
  %v1644 = vsel %vm262, %v1628, 0.0
  %v1645 = vsel %vm263, %v1629, 0.0
  %v1646 = vsel %vm264, %v1630, 0.0
  %v1647 = vsel %vm265, %v1631, 0.0
  %v1648 = vsel %vm266, %v1632, 0.0
  %v1649 = vsel %vm267, %v1633, 0.0
  %v1650 = vsel %vm268, %v1634, 0.0
  %v1651 = vsel %vm269, %v1635, 0.0
  %v1652 = vsel %vm270, %v1636, 0.0
  %v1653 = vsel %vm271, %v1637, 0.0
  %v1654 = vsel %vm272, %v1638, 0.0
  %v1655 = vsel %vm273, %v1639, 0.0
  %v1656 = vsel %vm274, %v1640, 0.0
  %v1657 = vsel %vm275, %v1641, 0.0
  %1658 = vrot.lane.b32.xlu0 %v117, 96
  %v1659 = vpop.permute.xlu0 %1658
  %1660 = vrot.lane.b32.xlu0 %v120, 96
  %v1661 = vpop.permute.xlu0 %1660
  %1662 = vrot.lane.b32.xlu0 %v123, 96
  %v1663 = vpop.permute.xlu0 %1662
  %1664 = vrot.lane.b32.xlu0 %v126, 96
  %v1665 = vpop.permute.xlu0 %1664
  %1666 = vrot.lane.b32.xlu0 %v129, 96
  %v1667 = vpop.permute.xlu0 %1666
  %1668 = vrot.lane.b32.xlu0 %v132, 96
  %v1669 = vpop.permute.xlu0 %1668
  %1670 = vrot.lane.b32.xlu0 %v135, 96
  %v1671 = vpop.permute.xlu0 %1670
  %1672 = vrot.lane.b32.xlu0 %v138, 96
  %v1673 = vpop.permute.xlu0 %1672
  %1674 = vrot.lane.b32.xlu0 %v141, 96
  %v1675 = vpop.permute.xlu0 %1674
  %1676 = vrot.lane.b32.xlu0 %v144, 96
  %v1677 = vpop.permute.xlu0 %1676
  %1678 = vrot.lane.b32.xlu0 %v147, 96
  %v1679 = vpop.permute.xlu0 %1678
  %1680 = vrot.lane.b32.xlu0 %v150, 96
  %v1681 = vpop.permute.xlu0 %1680
  %1682 = vrot.lane.b32.xlu0 %v153, 96
  %v1683 = vpop.permute.xlu0 %1682
  %1684 = vrot.lane.b32.xlu0 %v156, 96
  %v1685 = vpop.permute.xlu0 %1684
  %1686 = vrot.lane.b32.xlu0 %v159, 96
  %v1687 = vpop.permute.xlu0 %1686
  %1688 = vrot.lane.b32.xlu0 %v162, 96
  %v1689 = vpop.permute.xlu0 %1688
  %v1706 = vsel %vm453, %v1659, 1.0
  %v1707 = vsel %vm453, %v1661, 1.0
  %v1708 = vsel %vm453, %v1663, 1.0
  %v1709 = vsel %vm453, %v1665, 1.0
  %v1710 = vsel %vm453, %v1667, 1.0
  %v1711 = vsel %vm453, %v1669, 1.0
  %v1712 = vsel %vm453, %v1671, 1.0
  %v1713 = vsel %vm453, %v1673, 1.0
  %v1714 = vsel %vm453, %v1675, 1.0
  %v1715 = vsel %vm453, %v1677, 1.0
  %v1716 = vsel %vm453, %v1679, 1.0
  %v1717 = vsel %vm453, %v1681, 1.0
  %v1718 = vsel %vm453, %v1683, 1.0
  %v1719 = vsel %vm453, %v1685, 1.0
  %v1720 = vsel %vm453, %v1687, 1.0
  %v1721 = vsel %vm453, %v1689, 1.0
  %1722 = vmatpush.msra.mxu0 %v1721
  %1723 = vmatpush.msra.mxu0 %v1720
  %1724 = vmatpush.msra.mxu0 %v1719
  %1725 = vmatpush.msra.mxu0 %v1718
  %1726 = vmatpush.msra.mxu0 %v1717
  %1727 = vmatpush.msra.mxu0 %v1716
  %1728 = vmatpush.msra.mxu0 %v1715
  %1729 = vmatpush.msra.mxu0 %v1714
  %1730 = vmatpush.msra.mxu0 %v1713
  %1731 = vmatpush.msra.mxu0 %v1712
  %1732 = vmatpush.msra.mxu0 %v1711
  %1733 = vmatpush.msra.mxu0 %v1710
  %1734 = vmatpush.msra.mxu0 %v1709
  %1735 = vmatpush.msra.mxu0 %v1708
  %1736 = vmatpush.msra.mxu0 %v1707
  %1737 = vmatpush.msra.mxu0 %v1706
  %1738 = vmatmul.f32.gmra.mxu0 %v1642
  %v1739 = vpop.f32.mrf.mxu0
  %v1740 = vadd.f32 0.0, %v1739
  %1741 = vmatmul.f32.gmra.mxu0 %v1643
  %v1742 = vpop.f32.mrf.mxu0
  %v1743 = vadd.f32 0.0, %v1742
  %1744 = vmatmul.f32.gmra.mxu0 %v1644
  %v1745 = vpop.f32.mrf.mxu0
  %v1746 = vadd.f32 0.0, %v1745
  %1747 = vmatmul.f32.gmra.mxu0 %v1645
  %v1748 = vpop.f32.mrf.mxu0
  %v1749 = vadd.f32 0.0, %v1748
  %1750 = vmatmul.f32.gmra.mxu0 %v1646
  %v1751 = vpop.f32.mrf.mxu0
  %v1752 = vadd.f32 0.0, %v1751
  %1753 = vmatmul.f32.gmra.mxu0 %v1647
  %v1754 = vpop.f32.mrf.mxu0
  %v1755 = vadd.f32 0.0, %v1754
  %1756 = vmatmul.f32.gmra.mxu0 %v1648
  %v1757 = vpop.f32.mrf.mxu0
  %v1758 = vadd.f32 0.0, %v1757
  %1759 = vmatmul.f32.gmra.mxu0 %v1649
  %v1760 = vpop.f32.mrf.mxu0
  %v1761 = vadd.f32 0.0, %v1760
  %1762 = vmatmul.f32.gmra.mxu0 %v1650
  %v1763 = vpop.f32.mrf.mxu0
  %v1764 = vadd.f32 0.0, %v1763
  %1765 = vmatmul.f32.gmra.mxu0 %v1651
  %v1766 = vpop.f32.mrf.mxu0
  %v1767 = vadd.f32 0.0, %v1766
  %1768 = vmatmul.f32.gmra.mxu0 %v1652
  %v1769 = vpop.f32.mrf.mxu0
  %v1770 = vadd.f32 0.0, %v1769
  %1771 = vmatmul.f32.gmra.mxu0 %v1653
  %v1772 = vpop.f32.mrf.mxu0
  %v1773 = vadd.f32 0.0, %v1772
  %1774 = vmatmul.f32.gmra.mxu0 %v1654
  %v1775 = vpop.f32.mrf.mxu0
  %v1776 = vadd.f32 0.0, %v1775
  %1777 = vmatmul.f32.gmra.mxu0 %v1655
  %v1778 = vpop.f32.mrf.mxu0
  %v1779 = vadd.f32 0.0, %v1778
  %1780 = vmatmul.f32.gmra.mxu0 %v1656
  %v1781 = vpop.f32.mrf.mxu0
  %v1782 = vadd.f32 0.0, %v1781
  %1783 = vmatmul.f32.gmra.mxu0 %v1657
  %v1784 = vpop.f32.mrf.mxu0
  %v1785 = vadd.f32 0.0, %v1784
  %1786 = vdwg.mxu0
  %1788 = vset.pattern.permute.xlu0 16
  %1789 = vperm.xlu0 %1788, %v1740
  %v1790 = vpop.permute.xlu0 %1789
  %1793 = vset.pattern.permute.xlu0 16
  %1794 = vperm.xlu0 %1793, %v1743
  %v1795 = vpop.permute.xlu0 %1794
  %1798 = vset.pattern.permute.xlu0 16
  %1799 = vperm.xlu0 %1798, %v1746
  %v1800 = vpop.permute.xlu0 %1799
  %1803 = vset.pattern.permute.xlu0 16
  %1804 = vperm.xlu0 %1803, %v1749
  %v1805 = vpop.permute.xlu0 %1804
  %1808 = vset.pattern.permute.xlu0 16
  %1809 = vperm.xlu0 %1808, %v1752
  %v1810 = vpop.permute.xlu0 %1809
  %1813 = vset.pattern.permute.xlu0 16
  %1814 = vperm.xlu0 %1813, %v1755
  %v1815 = vpop.permute.xlu0 %1814
  %1818 = vset.pattern.permute.xlu0 16
  %1819 = vperm.xlu0 %1818, %v1758
  %v1820 = vpop.permute.xlu0 %1819
  %1823 = vset.pattern.permute.xlu0 16
  %1824 = vperm.xlu0 %1823, %v1761
  %v1825 = vpop.permute.xlu0 %1824
  %1828 = vset.pattern.permute.xlu0 16
  %1829 = vperm.xlu0 %1828, %v1764
  %v1830 = vpop.permute.xlu0 %1829
  %1833 = vset.pattern.permute.xlu0 16
  %1834 = vperm.xlu0 %1833, %v1767
  %v1835 = vpop.permute.xlu0 %1834
  %1838 = vset.pattern.permute.xlu0 16
  %1839 = vperm.xlu0 %1838, %v1770
  %v1840 = vpop.permute.xlu0 %1839
  %1843 = vset.pattern.permute.xlu0 16
  %1844 = vperm.xlu0 %1843, %v1773
  %v1845 = vpop.permute.xlu0 %1844
  %1848 = vset.pattern.permute.xlu0 16
  %1849 = vperm.xlu0 %1848, %v1776
  %v1850 = vpop.permute.xlu0 %1849
  %1853 = vset.pattern.permute.xlu0 16
  %1854 = vperm.xlu0 %1853, %v1779
  %v1855 = vpop.permute.xlu0 %1854
  %1858 = vset.pattern.permute.xlu0 16
  %1859 = vperm.xlu0 %1858, %v1782
  %v1860 = vpop.permute.xlu0 %1859
  %1863 = vset.pattern.permute.xlu0 16
  %1864 = vperm.xlu0 %1863, %v1785
  %v1865 = vpop.permute.xlu0 %1864
  %v1867 = vrcp.pop %v1790
  %v1868 = vmul.f32 %v1790, %v1867
  %v1869 = vsub.f32 1.0, %v1868
  %v1870 = vmul.f32 %v1867, %v1869
  %v1871 = vadd.f32 %v1867, %v1870
  %vm1872 = vweird.f32 %v1790
  %vm1873 = vweird.f32 %v1867
  %vm1874 = vmor %vm1872, %vm1873
  %v1875 = vsel %vm1874, %v1867, %v1871
  %v1876 = vand.u32 2147483647, %v1790
  %vm1877 = vcmp.eq.f32.partialorder %v1876, 8.507059e+37
  %v1878 = vand.u32 %v1790, 2147483648
  %v1879 = vor.u32 1.1754944e-38, %v1878
  %v1880 = vsel %vm1877, %v1879, %v1875
  %v1881 = vmul.f32 %v1740, %v1880
  %v1882 = vrcp.pop %v1795
  %v1883 = vmul.f32 %v1795, %v1882
  %v1884 = vsub.f32 1.0, %v1883
  %v1885 = vmul.f32 %v1882, %v1884
  %v1886 = vadd.f32 %v1882, %v1885
  %vm1887 = vweird.f32 %v1795
  %vm1888 = vweird.f32 %v1882
  %vm1889 = vmor %vm1887, %vm1888
  %v1890 = vsel %vm1889, %v1882, %v1886
  %v1891 = vand.u32 2147483647, %v1795
  %vm1892 = vcmp.eq.f32.partialorder %v1891, 8.507059e+37
  %v1893 = vand.u32 %v1795, 2147483648
  %v1894 = vor.u32 1.1754944e-38, %v1893
  %v1895 = vsel %vm1892, %v1894, %v1890
  %v1896 = vmul.f32 %v1743, %v1895
  %v1897 = vrcp.pop %v1800
  %v1898 = vmul.f32 %v1800, %v1897
  %v1899 = vsub.f32 1.0, %v1898
  %v1900 = vmul.f32 %v1897, %v1899
  %v1901 = vadd.f32 %v1897, %v1900
  %vm1902 = vweird.f32 %v1800
  %vm1903 = vweird.f32 %v1897
  %vm1904 = vmor %vm1902, %vm1903
  %v1905 = vsel %vm1904, %v1897, %v1901
  %v1906 = vand.u32 2147483647, %v1800
  %vm1907 = vcmp.eq.f32.partialorder %v1906, 8.507059e+37
  %v1908 = vand.u32 %v1800, 2147483648
  %v1909 = vor.u32 1.1754944e-38, %v1908
  %v1910 = vsel %vm1907, %v1909, %v1905
  %v1911 = vmul.f32 %v1746, %v1910
  %v1912 = vrcp.pop %v1805
  %v1913 = vmul.f32 %v1805, %v1912
  %v1914 = vsub.f32 1.0, %v1913
  %v1915 = vmul.f32 %v1912, %v1914
  %v1916 = vadd.f32 %v1912, %v1915
  %vm1917 = vweird.f32 %v1805
  %vm1918 = vweird.f32 %v1912
  %vm1919 = vmor %vm1917, %vm1918
  %v1920 = vsel %vm1919, %v1912, %v1916
  %v1921 = vand.u32 2147483647, %v1805
  %vm1922 = vcmp.eq.f32.partialorder %v1921, 8.507059e+37
  %v1923 = vand.u32 %v1805, 2147483648
  %v1924 = vor.u32 1.1754944e-38, %v1923
  %v1925 = vsel %vm1922, %v1924, %v1920
  %v1926 = vmul.f32 %v1749, %v1925
  %v1927 = vrcp.pop %v1810
  %v1928 = vmul.f32 %v1810, %v1927
  %v1929 = vsub.f32 1.0, %v1928
  %v1930 = vmul.f32 %v1927, %v1929
  %v1931 = vadd.f32 %v1927, %v1930
  %vm1932 = vweird.f32 %v1810
  %vm1933 = vweird.f32 %v1927
  %vm1934 = vmor %vm1932, %vm1933
  %v1935 = vsel %vm1934, %v1927, %v1931
  %v1936 = vand.u32 2147483647, %v1810
  %vm1937 = vcmp.eq.f32.partialorder %v1936, 8.507059e+37
  %v1938 = vand.u32 %v1810, 2147483648
  %v1939 = vor.u32 1.1754944e-38, %v1938
  %v1940 = vsel %vm1937, %v1939, %v1935
  %v1941 = vmul.f32 %v1752, %v1940
  %v1942 = vrcp.pop %v1815
  %v1943 = vmul.f32 %v1815, %v1942
  %v1944 = vsub.f32 1.0, %v1943
  %v1945 = vmul.f32 %v1942, %v1944
  %v1946 = vadd.f32 %v1942, %v1945
  %vm1947 = vweird.f32 %v1815
  %vm1948 = vweird.f32 %v1942
  %vm1949 = vmor %vm1947, %vm1948
  %v1950 = vsel %vm1949, %v1942, %v1946
  %v1951 = vand.u32 2147483647, %v1815
  %vm1952 = vcmp.eq.f32.partialorder %v1951, 8.507059e+37
  %v1953 = vand.u32 %v1815, 2147483648
  %v1954 = vor.u32 1.1754944e-38, %v1953
  %v1955 = vsel %vm1952, %v1954, %v1950
  %v1956 = vmul.f32 %v1755, %v1955
  %v1957 = vrcp.pop %v1820
  %v1958 = vmul.f32 %v1820, %v1957
  %v1959 = vsub.f32 1.0, %v1958
  %v1960 = vmul.f32 %v1957, %v1959
  %v1961 = vadd.f32 %v1957, %v1960
  %vm1962 = vweird.f32 %v1820
  %vm1963 = vweird.f32 %v1957
  %vm1964 = vmor %vm1962, %vm1963
  %v1965 = vsel %vm1964, %v1957, %v1961
  %v1966 = vand.u32 2147483647, %v1820
  %vm1967 = vcmp.eq.f32.partialorder %v1966, 8.507059e+37
  %v1968 = vand.u32 %v1820, 2147483648
  %v1969 = vor.u32 1.1754944e-38, %v1968
  %v1970 = vsel %vm1967, %v1969, %v1965
  %v1971 = vmul.f32 %v1758, %v1970
  %v1972 = vrcp.pop %v1825
  %v1973 = vmul.f32 %v1825, %v1972
  %v1974 = vsub.f32 1.0, %v1973
  %v1975 = vmul.f32 %v1972, %v1974
  %v1976 = vadd.f32 %v1972, %v1975
  %vm1977 = vweird.f32 %v1825
  %vm1978 = vweird.f32 %v1972
  %vm1979 = vmor %vm1977, %vm1978
  %v1980 = vsel %vm1979, %v1972, %v1976
  %v1981 = vand.u32 2147483647, %v1825
  %vm1982 = vcmp.eq.f32.partialorder %v1981, 8.507059e+37
  %v1983 = vand.u32 %v1825, 2147483648
  %v1984 = vor.u32 1.1754944e-38, %v1983
  %v1985 = vsel %vm1982, %v1984, %v1980
  %v1986 = vmul.f32 %v1761, %v1985
  %v1987 = vrcp.pop %v1830
  %v1988 = vmul.f32 %v1830, %v1987
  %v1989 = vsub.f32 1.0, %v1988
  %v1990 = vmul.f32 %v1987, %v1989
  %v1991 = vadd.f32 %v1987, %v1990
  %vm1992 = vweird.f32 %v1830
  %vm1993 = vweird.f32 %v1987
  %vm1994 = vmor %vm1992, %vm1993
  %v1995 = vsel %vm1994, %v1987, %v1991
  %v1996 = vand.u32 2147483647, %v1830
  %vm1997 = vcmp.eq.f32.partialorder %v1996, 8.507059e+37
  %v1998 = vand.u32 %v1830, 2147483648
  %v1999 = vor.u32 1.1754944e-38, %v1998
  %v2000 = vsel %vm1997, %v1999, %v1995
  %v2001 = vmul.f32 %v1764, %v2000
  %v2002 = vrcp.pop %v1835
  %v2003 = vmul.f32 %v1835, %v2002
  %v2004 = vsub.f32 1.0, %v2003
  %v2005 = vmul.f32 %v2002, %v2004
  %v2006 = vadd.f32 %v2002, %v2005
  %vm2007 = vweird.f32 %v1835
  %vm2008 = vweird.f32 %v2002
  %vm2009 = vmor %vm2007, %vm2008
  %v2010 = vsel %vm2009, %v2002, %v2006
  %v2011 = vand.u32 2147483647, %v1835
  %vm2012 = vcmp.eq.f32.partialorder %v2011, 8.507059e+37
  %v2013 = vand.u32 %v1835, 2147483648
  %v2014 = vor.u32 1.1754944e-38, %v2013
  %v2015 = vsel %vm2012, %v2014, %v2010
  %v2016 = vmul.f32 %v1767, %v2015
  %v2017 = vrcp.pop %v1840
  %v2018 = vmul.f32 %v1840, %v2017
  %v2019 = vsub.f32 1.0, %v2018
  %v2020 = vmul.f32 %v2017, %v2019
  %v2021 = vadd.f32 %v2017, %v2020
  %vm2022 = vweird.f32 %v1840
  %vm2023 = vweird.f32 %v2017
  %vm2024 = vmor %vm2022, %vm2023
  %v2025 = vsel %vm2024, %v2017, %v2021
  %v2026 = vand.u32 2147483647, %v1840
  %vm2027 = vcmp.eq.f32.partialorder %v2026, 8.507059e+37
  %v2028 = vand.u32 %v1840, 2147483648
  %v2029 = vor.u32 1.1754944e-38, %v2028
  %v2030 = vsel %vm2027, %v2029, %v2025
  %v2031 = vmul.f32 %v1770, %v2030
  %v2032 = vrcp.pop %v1845
  %v2033 = vmul.f32 %v1845, %v2032
  %v2034 = vsub.f32 1.0, %v2033
  %v2035 = vmul.f32 %v2032, %v2034
  %v2036 = vadd.f32 %v2032, %v2035
  %vm2037 = vweird.f32 %v1845
  %vm2038 = vweird.f32 %v2032
  %vm2039 = vmor %vm2037, %vm2038
  %v2040 = vsel %vm2039, %v2032, %v2036
  %v2041 = vand.u32 2147483647, %v1845
  %vm2042 = vcmp.eq.f32.partialorder %v2041, 8.507059e+37
  %v2043 = vand.u32 %v1845, 2147483648
  %v2044 = vor.u32 1.1754944e-38, %v2043
  %v2045 = vsel %vm2042, %v2044, %v2040
  %v2046 = vmul.f32 %v1773, %v2045
  %v2047 = vrcp.pop %v1850
  %v2048 = vmul.f32 %v1850, %v2047
  %v2049 = vsub.f32 1.0, %v2048
  %v2050 = vmul.f32 %v2047, %v2049
  %v2051 = vadd.f32 %v2047, %v2050
  %vm2052 = vweird.f32 %v1850
  %vm2053 = vweird.f32 %v2047
  %vm2054 = vmor %vm2052, %vm2053
  %v2055 = vsel %vm2054, %v2047, %v2051
  %v2056 = vand.u32 2147483647, %v1850
  %vm2057 = vcmp.eq.f32.partialorder %v2056, 8.507059e+37
  %v2058 = vand.u32 %v1850, 2147483648
  %v2059 = vor.u32 1.1754944e-38, %v2058
  %v2060 = vsel %vm2057, %v2059, %v2055
  %v2061 = vmul.f32 %v1776, %v2060
  %v2062 = vrcp.pop %v1855
  %v2063 = vmul.f32 %v1855, %v2062
  %v2064 = vsub.f32 1.0, %v2063
  %v2065 = vmul.f32 %v2062, %v2064
  %v2066 = vadd.f32 %v2062, %v2065
  %vm2067 = vweird.f32 %v1855
  %vm2068 = vweird.f32 %v2062
  %vm2069 = vmor %vm2067, %vm2068
  %v2070 = vsel %vm2069, %v2062, %v2066
  %v2071 = vand.u32 2147483647, %v1855
  %vm2072 = vcmp.eq.f32.partialorder %v2071, 8.507059e+37
  %v2073 = vand.u32 %v1855, 2147483648
  %v2074 = vor.u32 1.1754944e-38, %v2073
  %v2075 = vsel %vm2072, %v2074, %v2070
  %v2076 = vmul.f32 %v1779, %v2075
  %v2077 = vrcp.pop %v1860
  %v2078 = vmul.f32 %v1860, %v2077
  %v2079 = vsub.f32 1.0, %v2078
  %v2080 = vmul.f32 %v2077, %v2079
  %v2081 = vadd.f32 %v2077, %v2080
  %vm2082 = vweird.f32 %v1860
  %vm2083 = vweird.f32 %v2077
  %vm2084 = vmor %vm2082, %vm2083
  %v2085 = vsel %vm2084, %v2077, %v2081
  %v2086 = vand.u32 2147483647, %v1860
  %vm2087 = vcmp.eq.f32.partialorder %v2086, 8.507059e+37
  %v2088 = vand.u32 %v1860, 2147483648
  %v2089 = vor.u32 1.1754944e-38, %v2088
  %v2090 = vsel %vm2087, %v2089, %v2085
  %v2091 = vmul.f32 %v1782, %v2090
  %v2092 = vrcp.pop %v1865
  %v2093 = vmul.f32 %v1865, %v2092
  %v2094 = vsub.f32 1.0, %v2093
  %v2095 = vmul.f32 %v2092, %v2094
  %v2096 = vadd.f32 %v2092, %v2095
  %vm2097 = vweird.f32 %v1865
  %vm2098 = vweird.f32 %v2092
  %vm2099 = vmor %vm2097, %vm2098
  %v2100 = vsel %vm2099, %v2092, %v2096
  %v2101 = vand.u32 2147483647, %v1865
  %vm2102 = vcmp.eq.f32.partialorder %v2101, 8.507059e+37
  %v2103 = vand.u32 %v1865, 2147483648
  %v2104 = vor.u32 1.1754944e-38, %v2103
  %v2105 = vsel %vm2102, %v2104, %v2100
  %v2106 = vmul.f32 %v1785, %v2105
  %2107 = vset.pattern.permute.xlu0 71
  %2108 = vperm.xlu0 %2107, %v117
  %v2109 = vpop.permute.xlu0 %2108
  %2111 = vset.pattern.permute.xlu0 71
  %2112 = vperm.xlu0 %2111, %v120
  %v2113 = vpop.permute.xlu0 %2112
  %2115 = vset.pattern.permute.xlu0 71
  %2116 = vperm.xlu0 %2115, %v123
  %v2117 = vpop.permute.xlu0 %2116
  %2119 = vset.pattern.permute.xlu0 71
  %2120 = vperm.xlu0 %2119, %v126
  %v2121 = vpop.permute.xlu0 %2120
  %2123 = vset.pattern.permute.xlu0 71
  %2124 = vperm.xlu0 %2123, %v129
  %v2125 = vpop.permute.xlu0 %2124
  %2127 = vset.pattern.permute.xlu0 71
  %2128 = vperm.xlu0 %2127, %v132
  %v2129 = vpop.permute.xlu0 %2128
  %2131 = vset.pattern.permute.xlu0 71
  %2132 = vperm.xlu0 %2131, %v135
  %v2133 = vpop.permute.xlu0 %2132
  %2135 = vset.pattern.permute.xlu0 71
  %2136 = vperm.xlu0 %2135, %v138
  %v2137 = vpop.permute.xlu0 %2136
  %2139 = vset.pattern.permute.xlu0 71
  %2140 = vperm.xlu0 %2139, %v141
  %v2141 = vpop.permute.xlu0 %2140
  %2143 = vset.pattern.permute.xlu0 71
  %2144 = vperm.xlu0 %2143, %v144
  %v2145 = vpop.permute.xlu0 %2144
  %2147 = vset.pattern.permute.xlu0 71
  %2148 = vperm.xlu0 %2147, %v147
  %v2149 = vpop.permute.xlu0 %2148
  %2151 = vset.pattern.permute.xlu0 71
  %2152 = vperm.xlu0 %2151, %v150
  %v2153 = vpop.permute.xlu0 %2152
  %2155 = vset.pattern.permute.xlu0 71
  %2156 = vperm.xlu0 %2155, %v153
  %v2157 = vpop.permute.xlu0 %2156
  %2159 = vset.pattern.permute.xlu0 71
  %2160 = vperm.xlu0 %2159, %v156
  %v2161 = vpop.permute.xlu0 %2160
  %2163 = vset.pattern.permute.xlu0 71
  %2164 = vperm.xlu0 %2163, %v159
  %v2165 = vpop.permute.xlu0 %2164
  %2167 = vset.pattern.permute.xlu0 71
  %2168 = vperm.xlu0 %2167, %v162
  %v2169 = vpop.permute.xlu0 %2168
  %v2171 = vperm.slane %v244, 3
  %v2172 = vadd.f32 %v2109, %v2171
  %v2173 = vadd.f32 %v2113, %v2171
  %v2174 = vadd.f32 %v2117, %v2171
  %v2175 = vadd.f32 %v2121, %v2171
  %v2176 = vadd.f32 %v2125, %v2171
  %v2177 = vadd.f32 %v2129, %v2171
  %v2178 = vadd.f32 %v2133, %v2171
  %v2179 = vadd.f32 %v2137, %v2171
  %v2180 = vadd.f32 %v2141, %v2171
  %v2181 = vadd.f32 %v2145, %v2171
  %v2182 = vadd.f32 %v2149, %v2171
  %v2183 = vadd.f32 %v2153, %v2171
  %v2184 = vadd.f32 %v2157, %v2171
  %v2185 = vadd.f32 %v2161, %v2171
  %v2186 = vadd.f32 %v2165, %v2171
  %v2187 = vadd.f32 %v2169, %v2171
  %v2188 = vmul.f32 %v2172, 0.2
  %v2189 = vmul.f32 %v2173, 0.2
  %v2190 = vmul.f32 %v2174, 0.2
  %v2191 = vmul.f32 %v2175, 0.2
  %v2192 = vmul.f32 %v2176, 0.2
  %v2193 = vmul.f32 %v2177, 0.2
  %v2194 = vmul.f32 %v2178, 0.2
  %v2195 = vmul.f32 %v2179, 0.2
  %v2196 = vmul.f32 %v2180, 0.2
  %v2197 = vmul.f32 %v2181, 0.2
  %v2198 = vmul.f32 %v2182, 0.2
  %v2199 = vmul.f32 %v2183, 0.2
  %v2200 = vmul.f32 %v2184, 0.2
  %v2201 = vmul.f32 %v2185, 0.2
  %v2202 = vmul.f32 %v2186, 0.2
  %v2203 = vmul.f32 %v2187, 0.2
  %v2204 = vmax.f32 %v2172, %v2188
  %v2205 = vmax.f32 %v2173, %v2189
  %v2206 = vmax.f32 %v2174, %v2190
  %v2207 = vmax.f32 %v2175, %v2191
  %v2208 = vmax.f32 %v2176, %v2192
  %v2209 = vmax.f32 %v2177, %v2193
  %v2210 = vmax.f32 %v2178, %v2194
  %v2211 = vmax.f32 %v2179, %v2195
  %v2212 = vmax.f32 %v2180, %v2196
  %v2213 = vmax.f32 %v2181, %v2197
  %v2214 = vmax.f32 %v2182, %v2198
  %v2215 = vmax.f32 %v2183, %v2199
  %v2216 = vmax.f32 %v2184, %v2200
  %v2217 = vmax.f32 %v2185, %v2201
  %v2218 = vmax.f32 %v2186, %v2202
  %v2219 = vmax.f32 %v2187, %v2203
  %v2220 = vmul.f32 %v2204, 1.442695
  %v2221 = vpow.pop %v2220
  %v2222 = vmul.f32 %v2205, 1.442695
  %v2223 = vpow.pop %v2222
  %v2224 = vmul.f32 %v2206, 1.442695
  %v2225 = vpow.pop %v2224
  %v2226 = vmul.f32 %v2207, 1.442695
  %v2227 = vpow.pop %v2226
  %v2228 = vmul.f32 %v2208, 1.442695
  %v2229 = vpow.pop %v2228
  %v2230 = vmul.f32 %v2209, 1.442695
  %v2231 = vpow.pop %v2230
  %v2232 = vmul.f32 %v2210, 1.442695
  %v2233 = vpow.pop %v2232
  %v2234 = vmul.f32 %v2211, 1.442695
  %v2235 = vpow.pop %v2234
  %v2236 = vmul.f32 %v2212, 1.442695
  %v2237 = vpow.pop %v2236
  %v2238 = vmul.f32 %v2213, 1.442695
  %v2239 = vpow.pop %v2238
  %v2240 = vmul.f32 %v2214, 1.442695
  %v2241 = vpow.pop %v2240
  %v2242 = vmul.f32 %v2215, 1.442695
  %v2243 = vpow.pop %v2242
  %v2244 = vmul.f32 %v2216, 1.442695
  %v2245 = vpow.pop %v2244
  %v2246 = vmul.f32 %v2217, 1.442695
  %v2247 = vpow.pop %v2246
  %v2248 = vmul.f32 %v2218, 1.442695
  %v2249 = vpow.pop %v2248
  %v2250 = vmul.f32 %v2219, 1.442695
  %v2251 = vpow.pop %v2250
  %v2252 = vmin.f32 %v2221, 10.0
  %v2253 = vmin.f32 %v2223, 10.0
  %v2254 = vmin.f32 %v2225, 10.0
  %v2255 = vmin.f32 %v2227, 10.0
  %v2256 = vmin.f32 %v2229, 10.0
  %v2257 = vmin.f32 %v2231, 10.0
  %v2258 = vmin.f32 %v2233, 10.0
  %v2259 = vmin.f32 %v2235, 10.0
  %v2260 = vmin.f32 %v2237, 10.0
  %v2261 = vmin.f32 %v2239, 10.0
  %v2262 = vmin.f32 %v2241, 10.0
  %v2263 = vmin.f32 %v2243, 10.0
  %v2264 = vmin.f32 %v2245, 10.0
  %v2265 = vmin.f32 %v2247, 10.0
  %v2266 = vmin.f32 %v2249, 10.0
  %v2267 = vmin.f32 %v2251, 10.0
  %v2268 = vsel %vm260, %v2252, 0.0
  %v2269 = vsel %vm261, %v2253, 0.0
  %v2270 = vsel %vm262, %v2254, 0.0
  %v2271 = vsel %vm263, %v2255, 0.0
  %v2272 = vsel %vm264, %v2256, 0.0
  %v2273 = vsel %vm265, %v2257, 0.0
  %v2274 = vsel %vm266, %v2258, 0.0
  %v2275 = vsel %vm267, %v2259, 0.0
  %v2276 = vsel %vm268, %v2260, 0.0
  %v2277 = vsel %vm269, %v2261, 0.0
  %v2278 = vsel %vm270, %v2262, 0.0
  %v2279 = vsel %vm271, %v2263, 0.0
  %v2280 = vsel %vm272, %v2264, 0.0
  %v2281 = vsel %vm273, %v2265, 0.0
  %v2282 = vsel %vm274, %v2266, 0.0
  %v2283 = vsel %vm275, %v2267, 0.0
  %2284 = vrot.lane.b32.xlu0 %v117, 80
  %v2285 = vpop.permute.xlu0 %2284
  %2286 = vrot.lane.b32.xlu0 %v120, 80
  %v2287 = vpop.permute.xlu0 %2286
  %2288 = vrot.lane.b32.xlu0 %v123, 80
  %v2289 = vpop.permute.xlu0 %2288
  %2290 = vrot.lane.b32.xlu0 %v126, 80
  %v2291 = vpop.permute.xlu0 %2290
  %2292 = vrot.lane.b32.xlu0 %v129, 80
  %v2293 = vpop.permute.xlu0 %2292
  %2294 = vrot.lane.b32.xlu0 %v132, 80
  %v2295 = vpop.permute.xlu0 %2294
  %2296 = vrot.lane.b32.xlu0 %v135, 80
  %v2297 = vpop.permute.xlu0 %2296
  %2298 = vrot.lane.b32.xlu0 %v138, 80
  %v2299 = vpop.permute.xlu0 %2298
  %2300 = vrot.lane.b32.xlu0 %v141, 80
  %v2301 = vpop.permute.xlu0 %2300
  %2302 = vrot.lane.b32.xlu0 %v144, 80
  %v2303 = vpop.permute.xlu0 %2302
  %2304 = vrot.lane.b32.xlu0 %v147, 80
  %v2305 = vpop.permute.xlu0 %2304
  %2306 = vrot.lane.b32.xlu0 %v150, 80
  %v2307 = vpop.permute.xlu0 %2306
  %2308 = vrot.lane.b32.xlu0 %v153, 80
  %v2309 = vpop.permute.xlu0 %2308
  %2310 = vrot.lane.b32.xlu0 %v156, 80
  %v2311 = vpop.permute.xlu0 %2310
  %2312 = vrot.lane.b32.xlu0 %v159, 80
  %v2313 = vpop.permute.xlu0 %2312
  %2314 = vrot.lane.b32.xlu0 %v162, 80
  %v2315 = vpop.permute.xlu0 %2314
  %v2332 = vsel %vm453, %v2285, 1.0
  %v2333 = vsel %vm453, %v2287, 1.0
  %v2334 = vsel %vm453, %v2289, 1.0
  %v2335 = vsel %vm453, %v2291, 1.0
  %v2336 = vsel %vm453, %v2293, 1.0
  %v2337 = vsel %vm453, %v2295, 1.0
  %v2338 = vsel %vm453, %v2297, 1.0
  %v2339 = vsel %vm453, %v2299, 1.0
  %v2340 = vsel %vm453, %v2301, 1.0
  %v2341 = vsel %vm453, %v2303, 1.0
  %v2342 = vsel %vm453, %v2305, 1.0
  %v2343 = vsel %vm453, %v2307, 1.0
  %v2344 = vsel %vm453, %v2309, 1.0
  %v2345 = vsel %vm453, %v2311, 1.0
  %v2346 = vsel %vm453, %v2313, 1.0
  %v2347 = vsel %vm453, %v2315, 1.0
  %2348 = vmatpush.msra.mxu0 %v2347
  %2349 = vmatpush.msra.mxu0 %v2346
  %2350 = vmatpush.msra.mxu0 %v2345
  %2351 = vmatpush.msra.mxu0 %v2344
  %2352 = vmatpush.msra.mxu0 %v2343
  %2353 = vmatpush.msra.mxu0 %v2342
  %2354 = vmatpush.msra.mxu0 %v2341
  %2355 = vmatpush.msra.mxu0 %v2340
  %2356 = vmatpush.msra.mxu0 %v2339
  %2357 = vmatpush.msra.mxu0 %v2338
  %2358 = vmatpush.msra.mxu0 %v2337
  %2359 = vmatpush.msra.mxu0 %v2336
  %2360 = vmatpush.msra.mxu0 %v2335
  %2361 = vmatpush.msra.mxu0 %v2334
  %2362 = vmatpush.msra.mxu0 %v2333
  %2363 = vmatpush.msra.mxu0 %v2332
  %2364 = vmatmul.f32.gmra.mxu0 %v2268
  %v2365 = vpop.f32.mrf.mxu0
  %v2366 = vadd.f32 0.0, %v2365
  %2367 = vmatmul.f32.gmra.mxu0 %v2269
  %v2368 = vpop.f32.mrf.mxu0
  %v2369 = vadd.f32 0.0, %v2368
  %2370 = vmatmul.f32.gmra.mxu0 %v2270
  %v2371 = vpop.f32.mrf.mxu0
  %v2372 = vadd.f32 0.0, %v2371
  %2373 = vmatmul.f32.gmra.mxu0 %v2271
  %v2374 = vpop.f32.mrf.mxu0
  %v2375 = vadd.f32 0.0, %v2374
  %2376 = vmatmul.f32.gmra.mxu0 %v2272
  %v2377 = vpop.f32.mrf.mxu0
  %v2378 = vadd.f32 0.0, %v2377
  %2379 = vmatmul.f32.gmra.mxu0 %v2273
  %v2380 = vpop.f32.mrf.mxu0
  %v2381 = vadd.f32 0.0, %v2380
  %2382 = vmatmul.f32.gmra.mxu0 %v2274
  %v2383 = vpop.f32.mrf.mxu0
  %v2384 = vadd.f32 0.0, %v2383
  %2385 = vmatmul.f32.gmra.mxu0 %v2275
  %v2386 = vpop.f32.mrf.mxu0
  %v2387 = vadd.f32 0.0, %v2386
  %2388 = vmatmul.f32.gmra.mxu0 %v2276
  %v2389 = vpop.f32.mrf.mxu0
  %v2390 = vadd.f32 0.0, %v2389
  %2391 = vmatmul.f32.gmra.mxu0 %v2277
  %v2392 = vpop.f32.mrf.mxu0
  %v2393 = vadd.f32 0.0, %v2392
  %2394 = vmatmul.f32.gmra.mxu0 %v2278
  %v2395 = vpop.f32.mrf.mxu0
  %v2396 = vadd.f32 0.0, %v2395
  %2397 = vmatmul.f32.gmra.mxu0 %v2279
  %v2398 = vpop.f32.mrf.mxu0
  %v2399 = vadd.f32 0.0, %v2398
  %2400 = vmatmul.f32.gmra.mxu0 %v2280
  %v2401 = vpop.f32.mrf.mxu0
  %v2402 = vadd.f32 0.0, %v2401
  %2403 = vmatmul.f32.gmra.mxu0 %v2281
  %v2404 = vpop.f32.mrf.mxu0
  %v2405 = vadd.f32 0.0, %v2404
  %2406 = vmatmul.f32.gmra.mxu0 %v2282
  %v2407 = vpop.f32.mrf.mxu0
  %v2408 = vadd.f32 0.0, %v2407
  %2409 = vmatmul.f32.gmra.mxu0 %v2283
  %v2410 = vpop.f32.mrf.mxu0
  %v2411 = vadd.f32 0.0, %v2410
  %2412 = vdwg.mxu0
  %2414 = vset.pattern.permute.xlu0 16
  %2415 = vperm.xlu0 %2414, %v2366
  %v2416 = vpop.permute.xlu0 %2415
  %2419 = vset.pattern.permute.xlu0 16
  %2420 = vperm.xlu0 %2419, %v2369
  %v2421 = vpop.permute.xlu0 %2420
  %2424 = vset.pattern.permute.xlu0 16
  %2425 = vperm.xlu0 %2424, %v2372
  %v2426 = vpop.permute.xlu0 %2425
  %2429 = vset.pattern.permute.xlu0 16
  %2430 = vperm.xlu0 %2429, %v2375
  %v2431 = vpop.permute.xlu0 %2430
  %2434 = vset.pattern.permute.xlu0 16
  %2435 = vperm.xlu0 %2434, %v2378
  %v2436 = vpop.permute.xlu0 %2435
  %2439 = vset.pattern.permute.xlu0 16
  %2440 = vperm.xlu0 %2439, %v2381
  %v2441 = vpop.permute.xlu0 %2440
  %2444 = vset.pattern.permute.xlu0 16
  %2445 = vperm.xlu0 %2444, %v2384
  %v2446 = vpop.permute.xlu0 %2445
  %2449 = vset.pattern.permute.xlu0 16
  %2450 = vperm.xlu0 %2449, %v2387
  %v2451 = vpop.permute.xlu0 %2450
  %2454 = vset.pattern.permute.xlu0 16
  %2455 = vperm.xlu0 %2454, %v2390
  %v2456 = vpop.permute.xlu0 %2455
  %2459 = vset.pattern.permute.xlu0 16
  %2460 = vperm.xlu0 %2459, %v2393
  %v2461 = vpop.permute.xlu0 %2460
  %2464 = vset.pattern.permute.xlu0 16
  %2465 = vperm.xlu0 %2464, %v2396
  %v2466 = vpop.permute.xlu0 %2465
  %2469 = vset.pattern.permute.xlu0 16
  %2470 = vperm.xlu0 %2469, %v2399
  %v2471 = vpop.permute.xlu0 %2470
  %2474 = vset.pattern.permute.xlu0 16
  %2475 = vperm.xlu0 %2474, %v2402
  %v2476 = vpop.permute.xlu0 %2475
  %2479 = vset.pattern.permute.xlu0 16
  %2480 = vperm.xlu0 %2479, %v2405
  %v2481 = vpop.permute.xlu0 %2480
  %2484 = vset.pattern.permute.xlu0 16
  %2485 = vperm.xlu0 %2484, %v2408
  %v2486 = vpop.permute.xlu0 %2485
  %2489 = vset.pattern.permute.xlu0 16
  %2490 = vperm.xlu0 %2489, %v2411
  %v2491 = vpop.permute.xlu0 %2490
  %v2493 = vrcp.pop %v2416
  %v2494 = vmul.f32 %v2416, %v2493
  %v2495 = vsub.f32 1.0, %v2494
  %v2496 = vmul.f32 %v2493, %v2495
  %v2497 = vadd.f32 %v2493, %v2496
  %vm2498 = vweird.f32 %v2416
  %vm2499 = vweird.f32 %v2493
  %vm2500 = vmor %vm2498, %vm2499
  %v2501 = vsel %vm2500, %v2493, %v2497
  %v2502 = vand.u32 2147483647, %v2416
  %vm2503 = vcmp.eq.f32.partialorder %v2502, 8.507059e+37
  %v2504 = vand.u32 %v2416, 2147483648
  %v2505 = vor.u32 1.1754944e-38, %v2504
  %v2506 = vsel %vm2503, %v2505, %v2501
  %v2507 = vmul.f32 %v2366, %v2506
  %v2508 = vrcp.pop %v2421
  %v2509 = vmul.f32 %v2421, %v2508
  %v2510 = vsub.f32 1.0, %v2509
  %v2511 = vmul.f32 %v2508, %v2510
  %v2512 = vadd.f32 %v2508, %v2511
  %vm2513 = vweird.f32 %v2421
  %vm2514 = vweird.f32 %v2508
  %vm2515 = vmor %vm2513, %vm2514
  %v2516 = vsel %vm2515, %v2508, %v2512
  %v2517 = vand.u32 2147483647, %v2421
  %vm2518 = vcmp.eq.f32.partialorder %v2517, 8.507059e+37
  %v2519 = vand.u32 %v2421, 2147483648
  %v2520 = vor.u32 1.1754944e-38, %v2519
  %v2521 = vsel %vm2518, %v2520, %v2516
  %v2522 = vmul.f32 %v2369, %v2521
  %v2523 = vrcp.pop %v2426
  %v2524 = vmul.f32 %v2426, %v2523
  %v2525 = vsub.f32 1.0, %v2524
  %v2526 = vmul.f32 %v2523, %v2525
  %v2527 = vadd.f32 %v2523, %v2526
  %vm2528 = vweird.f32 %v2426
  %vm2529 = vweird.f32 %v2523
  %vm2530 = vmor %vm2528, %vm2529
  %v2531 = vsel %vm2530, %v2523, %v2527
  %v2532 = vand.u32 2147483647, %v2426
  %vm2533 = vcmp.eq.f32.partialorder %v2532, 8.507059e+37
  %v2534 = vand.u32 %v2426, 2147483648
  %v2535 = vor.u32 1.1754944e-38, %v2534
  %v2536 = vsel %vm2533, %v2535, %v2531
  %v2537 = vmul.f32 %v2372, %v2536
  %v2538 = vrcp.pop %v2431
  %v2539 = vmul.f32 %v2431, %v2538
  %v2540 = vsub.f32 1.0, %v2539
  %v2541 = vmul.f32 %v2538, %v2540
  %v2542 = vadd.f32 %v2538, %v2541
  %vm2543 = vweird.f32 %v2431
  %vm2544 = vweird.f32 %v2538
  %vm2545 = vmor %vm2543, %vm2544
  %v2546 = vsel %vm2545, %v2538, %v2542
  %v2547 = vand.u32 2147483647, %v2431
  %vm2548 = vcmp.eq.f32.partialorder %v2547, 8.507059e+37
  %v2549 = vand.u32 %v2431, 2147483648
  %v2550 = vor.u32 1.1754944e-38, %v2549
  %v2551 = vsel %vm2548, %v2550, %v2546
  %v2552 = vmul.f32 %v2375, %v2551
  %v2553 = vrcp.pop %v2436
  %v2554 = vmul.f32 %v2436, %v2553
  %v2555 = vsub.f32 1.0, %v2554
  %v2556 = vmul.f32 %v2553, %v2555
  %v2557 = vadd.f32 %v2553, %v2556
  %vm2558 = vweird.f32 %v2436
  %vm2559 = vweird.f32 %v2553
  %vm2560 = vmor %vm2558, %vm2559
  %v2561 = vsel %vm2560, %v2553, %v2557
  %v2562 = vand.u32 2147483647, %v2436
  %vm2563 = vcmp.eq.f32.partialorder %v2562, 8.507059e+37
  %v2564 = vand.u32 %v2436, 2147483648
  %v2565 = vor.u32 1.1754944e-38, %v2564
  %v2566 = vsel %vm2563, %v2565, %v2561
  %v2567 = vmul.f32 %v2378, %v2566
  %v2568 = vrcp.pop %v2441
  %v2569 = vmul.f32 %v2441, %v2568
  %v2570 = vsub.f32 1.0, %v2569
  %v2571 = vmul.f32 %v2568, %v2570
  %v2572 = vadd.f32 %v2568, %v2571
  %vm2573 = vweird.f32 %v2441
  %vm2574 = vweird.f32 %v2568
  %vm2575 = vmor %vm2573, %vm2574
  %v2576 = vsel %vm2575, %v2568, %v2572
  %v2577 = vand.u32 2147483647, %v2441
  %vm2578 = vcmp.eq.f32.partialorder %v2577, 8.507059e+37
  %v2579 = vand.u32 %v2441, 2147483648
  %v2580 = vor.u32 1.1754944e-38, %v2579
  %v2581 = vsel %vm2578, %v2580, %v2576
  %v2582 = vmul.f32 %v2381, %v2581
  %v2583 = vrcp.pop %v2446
  %v2584 = vmul.f32 %v2446, %v2583
  %v2585 = vsub.f32 1.0, %v2584
  %v2586 = vmul.f32 %v2583, %v2585
  %v2587 = vadd.f32 %v2583, %v2586
  %vm2588 = vweird.f32 %v2446
  %vm2589 = vweird.f32 %v2583
  %vm2590 = vmor %vm2588, %vm2589
  %v2591 = vsel %vm2590, %v2583, %v2587
  %v2592 = vand.u32 2147483647, %v2446
  %vm2593 = vcmp.eq.f32.partialorder %v2592, 8.507059e+37
  %v2594 = vand.u32 %v2446, 2147483648
  %v2595 = vor.u32 1.1754944e-38, %v2594
  %v2596 = vsel %vm2593, %v2595, %v2591
  %v2597 = vmul.f32 %v2384, %v2596
  %v2598 = vrcp.pop %v2451
  %v2599 = vmul.f32 %v2451, %v2598
  %v2600 = vsub.f32 1.0, %v2599
  %v2601 = vmul.f32 %v2598, %v2600
  %v2602 = vadd.f32 %v2598, %v2601
  %vm2603 = vweird.f32 %v2451
  %vm2604 = vweird.f32 %v2598
  %vm2605 = vmor %vm2603, %vm2604
  %v2606 = vsel %vm2605, %v2598, %v2602
  %v2607 = vand.u32 2147483647, %v2451
  %vm2608 = vcmp.eq.f32.partialorder %v2607, 8.507059e+37
  %v2609 = vand.u32 %v2451, 2147483648
  %v2610 = vor.u32 1.1754944e-38, %v2609
  %v2611 = vsel %vm2608, %v2610, %v2606
  %v2612 = vmul.f32 %v2387, %v2611
  %v2613 = vrcp.pop %v2456
  %v2614 = vmul.f32 %v2456, %v2613
  %v2615 = vsub.f32 1.0, %v2614
  %v2616 = vmul.f32 %v2613, %v2615
  %v2617 = vadd.f32 %v2613, %v2616
  %vm2618 = vweird.f32 %v2456
  %vm2619 = vweird.f32 %v2613
  %vm2620 = vmor %vm2618, %vm2619
  %v2621 = vsel %vm2620, %v2613, %v2617
  %v2622 = vand.u32 2147483647, %v2456
  %vm2623 = vcmp.eq.f32.partialorder %v2622, 8.507059e+37
  %v2624 = vand.u32 %v2456, 2147483648
  %v2625 = vor.u32 1.1754944e-38, %v2624
  %v2626 = vsel %vm2623, %v2625, %v2621
  %v2627 = vmul.f32 %v2390, %v2626
  %v2628 = vrcp.pop %v2461
  %v2629 = vmul.f32 %v2461, %v2628
  %v2630 = vsub.f32 1.0, %v2629
  %v2631 = vmul.f32 %v2628, %v2630
  %v2632 = vadd.f32 %v2628, %v2631
  %vm2633 = vweird.f32 %v2461
  %vm2634 = vweird.f32 %v2628
  %vm2635 = vmor %vm2633, %vm2634
  %v2636 = vsel %vm2635, %v2628, %v2632
  %v2637 = vand.u32 2147483647, %v2461
  %vm2638 = vcmp.eq.f32.partialorder %v2637, 8.507059e+37
  %v2639 = vand.u32 %v2461, 2147483648
  %v2640 = vor.u32 1.1754944e-38, %v2639
  %v2641 = vsel %vm2638, %v2640, %v2636
  %v2642 = vmul.f32 %v2393, %v2641
  %v2643 = vrcp.pop %v2466
  %v2644 = vmul.f32 %v2466, %v2643
  %v2645 = vsub.f32 1.0, %v2644
  %v2646 = vmul.f32 %v2643, %v2645
  %v2647 = vadd.f32 %v2643, %v2646
  %vm2648 = vweird.f32 %v2466
  %vm2649 = vweird.f32 %v2643
  %vm2650 = vmor %vm2648, %vm2649
  %v2651 = vsel %vm2650, %v2643, %v2647
  %v2652 = vand.u32 2147483647, %v2466
  %vm2653 = vcmp.eq.f32.partialorder %v2652, 8.507059e+37
  %v2654 = vand.u32 %v2466, 2147483648
  %v2655 = vor.u32 1.1754944e-38, %v2654
  %v2656 = vsel %vm2653, %v2655, %v2651
  %v2657 = vmul.f32 %v2396, %v2656
  %v2658 = vrcp.pop %v2471
  %v2659 = vmul.f32 %v2471, %v2658
  %v2660 = vsub.f32 1.0, %v2659
  %v2661 = vmul.f32 %v2658, %v2660
  %v2662 = vadd.f32 %v2658, %v2661
  %vm2663 = vweird.f32 %v2471
  %vm2664 = vweird.f32 %v2658
  %vm2665 = vmor %vm2663, %vm2664
  %v2666 = vsel %vm2665, %v2658, %v2662
  %v2667 = vand.u32 2147483647, %v2471
  %vm2668 = vcmp.eq.f32.partialorder %v2667, 8.507059e+37
  %v2669 = vand.u32 %v2471, 2147483648
  %v2670 = vor.u32 1.1754944e-38, %v2669
  %v2671 = vsel %vm2668, %v2670, %v2666
  %v2672 = vmul.f32 %v2399, %v2671
  %v2673 = vrcp.pop %v2476
  %v2674 = vmul.f32 %v2476, %v2673
  %v2675 = vsub.f32 1.0, %v2674
  %v2676 = vmul.f32 %v2673, %v2675
  %v2677 = vadd.f32 %v2673, %v2676
  %vm2678 = vweird.f32 %v2476
  %vm2679 = vweird.f32 %v2673
  %vm2680 = vmor %vm2678, %vm2679
  %v2681 = vsel %vm2680, %v2673, %v2677
  %v2682 = vand.u32 2147483647, %v2476
  %vm2683 = vcmp.eq.f32.partialorder %v2682, 8.507059e+37
  %v2684 = vand.u32 %v2476, 2147483648
  %v2685 = vor.u32 1.1754944e-38, %v2684
  %v2686 = vsel %vm2683, %v2685, %v2681
  %v2687 = vmul.f32 %v2402, %v2686
  %v2688 = vrcp.pop %v2481
  %v2689 = vmul.f32 %v2481, %v2688
  %v2690 = vsub.f32 1.0, %v2689
  %v2691 = vmul.f32 %v2688, %v2690
  %v2692 = vadd.f32 %v2688, %v2691
  %vm2693 = vweird.f32 %v2481
  %vm2694 = vweird.f32 %v2688
  %vm2695 = vmor %vm2693, %vm2694
  %v2696 = vsel %vm2695, %v2688, %v2692
  %v2697 = vand.u32 2147483647, %v2481
  %vm2698 = vcmp.eq.f32.partialorder %v2697, 8.507059e+37
  %v2699 = vand.u32 %v2481, 2147483648
  %v2700 = vor.u32 1.1754944e-38, %v2699
  %v2701 = vsel %vm2698, %v2700, %v2696
  %v2702 = vmul.f32 %v2405, %v2701
  %v2703 = vrcp.pop %v2486
  %v2704 = vmul.f32 %v2486, %v2703
  %v2705 = vsub.f32 1.0, %v2704
  %v2706 = vmul.f32 %v2703, %v2705
  %v2707 = vadd.f32 %v2703, %v2706
  %vm2708 = vweird.f32 %v2486
  %vm2709 = vweird.f32 %v2703
  %vm2710 = vmor %vm2708, %vm2709
  %v2711 = vsel %vm2710, %v2703, %v2707
  %v2712 = vand.u32 2147483647, %v2486
  %vm2713 = vcmp.eq.f32.partialorder %v2712, 8.507059e+37
  %v2714 = vand.u32 %v2486, 2147483648
  %v2715 = vor.u32 1.1754944e-38, %v2714
  %v2716 = vsel %vm2713, %v2715, %v2711
  %v2717 = vmul.f32 %v2408, %v2716
  %v2718 = vrcp.pop %v2491
  %v2719 = vmul.f32 %v2491, %v2718
  %v2720 = vsub.f32 1.0, %v2719
  %v2721 = vmul.f32 %v2718, %v2720
  %v2722 = vadd.f32 %v2718, %v2721
  %vm2723 = vweird.f32 %v2491
  %vm2724 = vweird.f32 %v2718
  %vm2725 = vmor %vm2723, %vm2724
  %v2726 = vsel %vm2725, %v2718, %v2722
  %v2727 = vand.u32 2147483647, %v2491
  %vm2728 = vcmp.eq.f32.partialorder %v2727, 8.507059e+37
  %v2729 = vand.u32 %v2491, 2147483648
  %v2730 = vor.u32 1.1754944e-38, %v2729
  %v2731 = vsel %vm2728, %v2730, %v2726
  %v2732 = vmul.f32 %v2411, %v2731
  %2749 = vrot.lane.b32.xlu0 %v1255, 16
  %v2750 = vpop.permute.xlu0 %2749
  %2751 = vrot.lane.b32.xlu0 %v1270, 16
  %v2752 = vpop.permute.xlu0 %2751
  %2753 = vrot.lane.b32.xlu0 %v1285, 16
  %v2754 = vpop.permute.xlu0 %2753
  %2755 = vrot.lane.b32.xlu0 %v1300, 16
  %v2756 = vpop.permute.xlu0 %2755
  %2757 = vrot.lane.b32.xlu0 %v1315, 16
  %v2758 = vpop.permute.xlu0 %2757
  %2759 = vrot.lane.b32.xlu0 %v1330, 16
  %v2760 = vpop.permute.xlu0 %2759
  %2761 = vrot.lane.b32.xlu0 %v1345, 16
  %v2762 = vpop.permute.xlu0 %2761
  %2763 = vrot.lane.b32.xlu0 %v1360, 16
  %v2764 = vpop.permute.xlu0 %2763
  %2765 = vrot.lane.b32.xlu0 %v1375, 16
  %v2766 = vpop.permute.xlu0 %2765
  %2767 = vrot.lane.b32.xlu0 %v1390, 16
  %v2768 = vpop.permute.xlu0 %2767
  %2769 = vrot.lane.b32.xlu0 %v1405, 16
  %v2770 = vpop.permute.xlu0 %2769
  %2771 = vrot.lane.b32.xlu0 %v1420, 16
  %v2772 = vpop.permute.xlu0 %2771
  %2773 = vrot.lane.b32.xlu0 %v1435, 16
  %v2774 = vpop.permute.xlu0 %2773
  %2775 = vrot.lane.b32.xlu0 %v1450, 16
  %v2776 = vpop.permute.xlu0 %2775
  %2777 = vrot.lane.b32.xlu0 %v1465, 16
  %v2778 = vpop.permute.xlu0 %2777
  %2779 = vrot.lane.b32.xlu0 %v1480, 16
  %v2780 = vpop.permute.xlu0 %2779
  %2813 = vrot.lane.b32.xlu0 %v1881, 32
  %v2814 = vpop.permute.xlu0 %2813
  %2815 = vrot.lane.b32.xlu0 %v1896, 32
  %v2816 = vpop.permute.xlu0 %2815
  %2817 = vrot.lane.b32.xlu0 %v1911, 32
  %v2818 = vpop.permute.xlu0 %2817
  %2819 = vrot.lane.b32.xlu0 %v1926, 32
  %v2820 = vpop.permute.xlu0 %2819
  %2821 = vrot.lane.b32.xlu0 %v1941, 32
  %v2822 = vpop.permute.xlu0 %2821
  %2823 = vrot.lane.b32.xlu0 %v1956, 32
  %v2824 = vpop.permute.xlu0 %2823
  %2825 = vrot.lane.b32.xlu0 %v1971, 32
  %v2826 = vpop.permute.xlu0 %2825
  %2827 = vrot.lane.b32.xlu0 %v1986, 32
  %v2828 = vpop.permute.xlu0 %2827
  %2829 = vrot.lane.b32.xlu0 %v2001, 32
  %v2830 = vpop.permute.xlu0 %2829
  %2831 = vrot.lane.b32.xlu0 %v2016, 32
  %v2832 = vpop.permute.xlu0 %2831
  %2833 = vrot.lane.b32.xlu0 %v2031, 32
  %v2834 = vpop.permute.xlu0 %2833
  %2835 = vrot.lane.b32.xlu0 %v2046, 32
  %v2836 = vpop.permute.xlu0 %2835
  %2837 = vrot.lane.b32.xlu0 %v2061, 32
  %v2838 = vpop.permute.xlu0 %2837
  %2839 = vrot.lane.b32.xlu0 %v2076, 32
  %v2840 = vpop.permute.xlu0 %2839
  %2841 = vrot.lane.b32.xlu0 %v2091, 32
  %v2842 = vpop.permute.xlu0 %2841
  %2843 = vrot.lane.b32.xlu0 %v2106, 32
  %v2844 = vpop.permute.xlu0 %2843
  %2877 = vrot.lane.b32.xlu0 %v2507, 48
  %v2878 = vpop.permute.xlu0 %2877
  %2879 = vrot.lane.b32.xlu0 %v2522, 48
  %v2880 = vpop.permute.xlu0 %2879
  %2881 = vrot.lane.b32.xlu0 %v2537, 48
  %v2882 = vpop.permute.xlu0 %2881
  %2883 = vrot.lane.b32.xlu0 %v2552, 48
  %v2884 = vpop.permute.xlu0 %2883
  %2885 = vrot.lane.b32.xlu0 %v2567, 48
  %v2886 = vpop.permute.xlu0 %2885
  %2887 = vrot.lane.b32.xlu0 %v2582, 48
  %v2888 = vpop.permute.xlu0 %2887
  %2889 = vrot.lane.b32.xlu0 %v2597, 48
  %v2890 = vpop.permute.xlu0 %2889
  %2891 = vrot.lane.b32.xlu0 %v2612, 48
  %v2892 = vpop.permute.xlu0 %2891
  %2893 = vrot.lane.b32.xlu0 %v2627, 48
  %v2894 = vpop.permute.xlu0 %2893
  %2895 = vrot.lane.b32.xlu0 %v2642, 48
  %v2896 = vpop.permute.xlu0 %2895
  %2897 = vrot.lane.b32.xlu0 %v2657, 48
  %v2898 = vpop.permute.xlu0 %2897
  %2899 = vrot.lane.b32.xlu0 %v2672, 48
  %v2900 = vpop.permute.xlu0 %2899
  %2901 = vrot.lane.b32.xlu0 %v2687, 48
  %v2902 = vpop.permute.xlu0 %2901
  %2903 = vrot.lane.b32.xlu0 %v2702, 48
  %v2904 = vpop.permute.xlu0 %2903
  %2905 = vrot.lane.b32.xlu0 %v2717, 48
  %v2906 = vpop.permute.xlu0 %2905
  %2907 = vrot.lane.b32.xlu0 %v2732, 48
  %v2908 = vpop.permute.xlu0 %2907
  %v2925 = vsel %vm453, %v629, %v2750
  %v2926 = vsel %vm453, %v644, %v2752
  %v2927 = vsel %vm453, %v659, %v2754
  %v2928 = vsel %vm453, %v674, %v2756
  %v2929 = vsel %vm453, %v689, %v2758
  %v2930 = vsel %vm453, %v704, %v2760
  %v2931 = vsel %vm453, %v719, %v2762
  %v2932 = vsel %vm453, %v734, %v2764
  %v2933 = vsel %vm453, %v749, %v2766
  %v2934 = vsel %vm453, %v764, %v2768
  %v2935 = vsel %vm453, %v779, %v2770
  %v2936 = vsel %vm453, %v794, %v2772
  %v2937 = vsel %vm453, %v809, %v2774
  %v2938 = vsel %vm453, %v824, %v2776
  %v2939 = vsel %vm453, %v839, %v2778
  %v2940 = vsel %vm453, %v854, %v2780
  %v2941 = vsel %vm50, %v2925, %v2814
  %v2942 = vsel %vm50, %v2926, %v2816
  %v2943 = vsel %vm50, %v2927, %v2818
  %v2944 = vsel %vm50, %v2928, %v2820
  %v2945 = vsel %vm50, %v2929, %v2822
  %v2946 = vsel %vm50, %v2930, %v2824
  %v2947 = vsel %vm50, %v2931, %v2826
  %v2948 = vsel %vm50, %v2932, %v2828
  %v2949 = vsel %vm50, %v2933, %v2830
  %v2950 = vsel %vm50, %v2934, %v2832
  %v2951 = vsel %vm50, %v2935, %v2834
  %v2952 = vsel %vm50, %v2936, %v2836
  %v2953 = vsel %vm50, %v2937, %v2838
  %v2954 = vsel %vm50, %v2938, %v2840
  %v2955 = vsel %vm50, %v2939, %v2842
  %v2956 = vsel %vm50, %v2940, %v2844
  %vm2957 = vcmask 392192
  %v2958 = vsel %vm2957, %v2941, %v2878
  %v2959 = vsel %vm2957, %v2942, %v2880
  %v2960 = vsel %vm2957, %v2943, %v2882
  %v2961 = vsel %vm2957, %v2944, %v2884
  %v2962 = vsel %vm2957, %v2945, %v2886
  %v2963 = vsel %vm2957, %v2946, %v2888
  %v2964 = vsel %vm2957, %v2947, %v2890
  %v2965 = vsel %vm2957, %v2948, %v2892
  %v2966 = vsel %vm2957, %v2949, %v2894
  %v2967 = vsel %vm2957, %v2950, %v2896
  %v2968 = vsel %vm2957, %v2951, %v2898
  %v2969 = vsel %vm2957, %v2952, %v2900
  %v2970 = vsel %vm2957, %v2953, %v2902
  %v2971 = vsel %vm2957, %v2954, %v2904
  %v2972 = vsel %vm2957, %v2955, %v2906
  %v2973 = vsel %vm2957, %v2956, %v2908
  %vm2974 = vcmask 523264
  %2975 = vst.msk [vmem:[%s3] sm:$0xff] %vm2974, %v2958
  %2976 = vst.msk [vmem:[%s3 + $0x8] sm:$0xff] %vm2974, %v2959
  %2977 = vst.msk [vmem:[%s3 + $0x10] sm:$0xff] %vm2974, %v2960
  %2978 = vst.msk [vmem:[%s3 + $0x18] sm:$0xff] %vm2974, %v2961
  %2979 = vst.msk [vmem:[%s3 + $0x20] sm:$0xff] %vm2974, %v2962
  %2980 = vst.msk [vmem:[%s3 + $0x28] sm:$0xff] %vm2974, %v2963
  %2981 = vst.msk [vmem:[%s3 + $0x30] sm:$0xff] %vm2974, %v2964
  %2982 = vst.msk [vmem:[%s3 + $0x38] sm:$0xff] %vm2974, %v2965
  %2983 = vst.msk [vmem:[%s3 + $0x40] sm:$0xff] %vm2974, %v2966
  %2984 = vst.msk [vmem:[%s3 + $0x48] sm:$0xff] %vm2974, %v2967
  %2985 = vst.msk [vmem:[%s3 + $0x50] sm:$0xff] %vm2974, %v2968
  %2986 = vst.msk [vmem:[%s3 + $0x58] sm:$0xff] %vm2974, %v2969
  %2987 = vst.msk [vmem:[%s3 + $0x60] sm:$0xff] %vm2974, %v2970
  %2988 = vst.msk [vmem:[%s3 + $0x68] sm:$0xff] %vm2974, %v2971
  %2989 = vst.msk [vmem:[%s3 + $0x70] sm:$0xff] %vm2974, %v2972
  %2990 = vst.msk [vmem:[%s3 + $0x78] sm:$0xff] %vm2974, %v2973
  // Predicated region
  $region14: #{tpu_custom_call.1} parent=0 // pred_check
    _
  $region15: #{tpu_custom_call.1} parent=0 // pred_check_branch
    %2992 = sbr.rel (0) target = $region17
  $region16: #{tpu_custom_call.1} parent=0 // pred_region
    _
  $region17: #{tpu_custom_call.1} parent=0 // pred_fallthru
    _
  // Predicated region
  $region18: #{tpu_custom_call.1} parent=0 // pred_check
    _
  $region19: #{tpu_custom_call.1} parent=0 // pred_check_branch
    %2994 = sbr.rel (0) target = $region21
  $region20: #{tpu_custom_call.1} parent=0 // pred_region
    _
  $region21: #{tpu_custom_call.1} parent=0 // pred_fallthru
    _

</llo_original>
